<compile_context>
chip_gen: v6e
topology: v6e:2x2x1
jax: 0.10.0
libtpu: 0.0.40
codegen_flags: <defaults>
</compile_context>

<pallas_src>
import jax
import jax.numpy as jnp
import numpy as np
from jax import lax
from jax.experimental import pallas as pl
from jax.experimental.pallas import tpu as pltpu

K = 7      # spatial-attention conv kernel size
PAD = 3    # padding = 3 (same-size output)


def cbam_kernel(x_ref, w1t_ref, b1_ref, w2t_ref, b2_ref, conv_ref, bs_ref, out_ref):
    x = x_ref[...]                                   # (Nb, C, H*W) f32
    Nb, C, HW = x.shape

    # ---- channel attention: GAP -> 1x1 conv -> ReLU -> 1x1 conv -> sigmoid ----
    gap = jnp.sum(x, axis=2) * (1.0 / HW)            # (Nb, C)   lane reduce
    h = jnp.dot(gap, w1t_ref[...],
                preferred_element_type=jnp.float32) + b1_ref[...]    # (Nb, Cr)
    h = jnp.maximum(h, 0.0)
    z = jnp.dot(h, w2t_ref[...],
                preferred_element_type=jnp.float32) + b2_ref[...]    # (Nb, C)
    ca = pl.reciprocal(1.0 + jnp.exp(-z), approx=True)               # sigmoid on EUP

    # Channel-scaled activations stay as a value (no store/reload round trip).
    xc = x * ca[:, :, None]                          # (Nb, C, HW)

    # ---- spatial attention: channel max/mean -> 7x7 conv (pad 3) -> sigmoid ----
    mx = jnp.max(xc, axis=1)                         # (Nb, HW)  sublane reduce
    av = jnp.sum(xc, axis=1) * (1.0 / C)             # (Nb, HW)
    pools = jnp.concatenate([mx, av], axis=1)        # (Nb, 2*HW) = cat([max, mean])

    # Dense conv matrix (taps + zero-padding masks baked in) -> one MXU matmul.
    acc = jnp.dot(pools, conv_ref[...],
                  preferred_element_type=jnp.float32) + bs_ref[0]    # (Nb, HW)
    sa = pl.reciprocal(1.0 + jnp.exp(-acc), approx=True)             # sigmoid on EUP

    # Single store of the output block.
    out_ref[...] = (xc * sa[:, None, :]).astype(out_ref.dtype)


def _build_conv_matrix(ws, H, W):
    """Dense (2*H*W, H*W) matrix equivalent to Conv2d(2, 1, 7, padding=3).

    conv_mat[ch*HW + in_idx, out_idx] = weight[0, ch, ky, kx] when the input
    pixel `in_idx` feeds output pixel `out_idx` through tap (ky, kx); zero
    elsewhere (zero padding handled by simply omitting out-of-bounds taps).
    """
    HW = H * W
    taps = np.zeros((HW, HW), np.int32)              # 0 = no tap, else 1 + ky*K + kx
    for out_idx in range(HW):
        r, c = divmod(out_idx, W)
        for ky in range(K):
            ir = r + ky - PAD
            if ir < 0 or ir >= H:
                continue
            for kx in range(K):
                ic = c + kx - PAD
                if ic < 0 or ic >= W:
                    continue
                taps[ir * W + ic, out_idx] = 1 + ky * K + kx
    w = jnp.asarray(ws, jnp.float32).reshape(2, K * K)
    w_pad = jnp.concatenate([jnp.zeros((2, 1), jnp.float32), w], axis=1)   # (2, 1+49)
    return jnp.concatenate([w_pad[0][taps], w_pad[1][taps]], axis=0)       # (2*HW, HW)


def cbam_pallas(x, w1, b1, w2, b2, ws, bs, block_n=None):
    """x: (N, C, H, W).  Weight shapes mirror the PyTorch module:
       w1 (Cr, C), b1 (Cr,), w2 (C, Cr), b2 (C,), ws (1, 2, 7, 7), bs (1,)."""
    N, C, H, W = x.shape
    HW = H * W
    Cr = w1.shape[0]

    x2 = x.reshape(N, C, HW)                         # lane-dense view (free for NCHW)
    w1t = jnp.transpose(w1).astype(jnp.float32)      # (C, Cr)
    w2t = jnp.transpose(w2).astype(jnp.float32)      # (Cr, C)
    b1r = b1.reshape(1, Cr).astype(jnp.float32)
    b2r = b2.reshape(1, C).astype(jnp.float32)
    bs1 = bs.reshape(1).astype(jnp.float32)
    conv_mat = _build_conv_matrix(ws, H, W)          # (2*HW, HW)

    itemsize = x.dtype.itemsize
    per_img = C * HW * itemsize
    conv_bytes = 2 * HW * HW * 4

    # VMEM budget from hardware (64 MiB/TC on v7x, 128 MiB on v5e/v6e); target
    # <= ~0.6 of it for: 2x double-buffered input + 2x output blocks, the conv
    # matrix, and ~2 blocks of live intermediates (xc, pools, spills).
    try:
        vmem_cap = pltpu.get_tpu_info().vmem_capacity_bytes
    except Exception:
        vmem_cap = 64 * 1024 * 1024                  # conservative (v7x per-TC)
    vmem_target = int(0.6 * vmem_cap)

    if block_n is None:
        # 8..32 keeps full sublanes and the spatial-attention working set in
        # vregs; >= 2 grid steps (when N allows) lets "parallel" feed both v7x TCs.
        block_n = 8 if N <= 16 else min(32, 8 * pl.cdiv(pl.cdiv(N, 2), 8))
    block_n = int(max(1, block_n))
    max_bn_from_vmem = max(1, (vmem_target - conv_bytes - (4 << 20)) // (6 * per_img))
    block_n = int(min(block_n, max_bn_from_vmem, max(N, 1)))

    # Pad the batch to a multiple of block_n (avoids collapsing to block_n=1).
    grid_n = pl.cdiv(N, block_n)
    n_pad = grid_n * block_n
    if n_pad != N:
        x2 = jnp.pad(x2, ((0, n_pad - N), (0, 0), (0, 0)))

    blk_bytes = block_n * C * HW * itemsize
    vmem_limit = int(min(vmem_target,
                         max(16 << 20, 6 * blk_bytes + conv_bytes + (8 << 20))))

    out2 = pl.pallas_call(
        cbam_kernel,
        out_shape=jax.ShapeDtypeStruct((n_pad, C, HW), x.dtype),
        grid=(grid_n,),
        in_specs=[
            pl.BlockSpec((block_n, C, HW), lambda b: (b, 0, 0)),      # x (lane-dense)
            pl.BlockSpec((C, Cr), lambda b: (0, 0)),                  # w1^T
            pl.BlockSpec((1, Cr), lambda b: (0, 0)),                  # b1
            pl.BlockSpec((Cr, C), lambda b: (0, 0)),                  # w2^T
            pl.BlockSpec((1, C), lambda b: (0, 0)),                   # b2
            pl.BlockSpec((2 * HW, HW), lambda b: (0, 0)),             # conv matrix
            pl.BlockSpec(memory_space=pltpu.MemorySpace.SMEM),        # bs (scalar)
        ],
        out_specs=pl.BlockSpec((block_n, C, HW), lambda b: (b, 0, 0)),
        compiler_params=pltpu.CompilerParams(
            dimension_semantics=("parallel",),        # v7x: shard batch steps over 2 TCs
            vmem_limit_bytes=vmem_limit,
        ),
    )(x2, w1t, b1r, w2t, b2r, conv_mat, bs1)

    return out2[:N].reshape(N, C, H, W)


def cbam_ref(x, w1, b1, w2, b2, ws, bs):
    """Pure-JAX reference matching the PyTorch forward."""
    avg = jnp.mean(x, axis=(2, 3))                   # (N, C)
    h = jnp.maximum(avg @ w1.T + b1, 0.0)            # (N, Cr)
    ca = jax.nn.sigmoid(h @ w2.T + b2)               # (N, C)
    x_ca = x * ca[:, :, None, None]
    mx = jnp.max(x_ca, axis=1, keepdims=True)
    av = jnp.mean(x_ca, axis=1, keepdims=True)
    inp = jnp.concatenate([mx, av], axis=1)          # (N, 2, H, W)
    sa = lax.conv_general_dilated(
        inp, ws, window_strides=(1, 1), padding=((PAD, PAD), (PAD, PAD)),
        dimension_numbers=("NCHW", "OIHW", "NCHW")) + bs.reshape(1, 1, 1, 1)
    return x_ca * jax.nn.sigmoid(sa)


if __name__ == "__main__":
    N, C, H, W = 16, 32, 16, 16
    reduction_ratio = 16
    Cr = C // reduction_ratio                        # = 2

    key = jax.random.PRNGKey(0)
    k0, k1, k2, k3, k4, k5, k6 = jax.random.split(key, 7)
    x = jax.random.normal(k0, (N, C, H, W), jnp.float32)
    w1 = jax.random.normal(k1, (Cr, C), jnp.float32) * 0.2     # Conv2d(C, Cr, 1).weight
    b1 = jax.random.normal(k2, (Cr,), jnp.float32) * 0.1
    w2 = jax.random.normal(k3, (C, Cr), jnp.float32) * 0.2     # Conv2d(Cr, C, 1).weight
    b2 = jax.random.normal(k4, (C,), jnp.float32) * 0.1
    ws = jax.random.normal(k5, (1, 2, K, K), jnp.float32) * 0.1    # Conv2d(2, 1, 7).weight
    bs = jax.random.normal(k6, (1,), jnp.float32) * 0.1

    out = cbam_pallas(x, w1, b1, w2, b2, ws, bs)     # 2 "parallel" grid steps of 8 images
    out = jax.block_until_ready(out)

    ref = cbam_ref(x, w1, b1, w2, b2, ws, bs)
    # Tolerance accounts for the approximate EUP reciprocal used in both sigmoids;
    # any semantic error (wrong conv matrix / pooling / ordering) is far larger.
    np.testing.assert_allclose(np.asarray(out), np.asarray(ref), rtol=1e-2, atol=1e-2)
    print("KERNEL_OK")
</pallas_src>

<mosaic_0001>
module attributes {stable_mosaic.version = 11 : i64} {
  func.func @cbam_kernel(%arg0: i32, %arg1: memref<8x32x256xf32, #tpu.memory_space<vmem>>, %arg2: memref<32x2xf32, #tpu.memory_space<vmem>>, %arg3: memref<1x2xf32, #tpu.memory_space<vmem>>, %arg4: memref<2x32xf32, #tpu.memory_space<vmem>>, %arg5: memref<1x32xf32, #tpu.memory_space<vmem>>, %arg6: memref<512x256xf32, #tpu.memory_space<vmem>>, %arg7: memref<1xf32, #tpu.memory_space<smem>>, %arg8: memref<8x32x256xf32, #tpu.memory_space<vmem>>) attributes {dimension_semantics = [#tpu.dimension_semantics<parallel>], iteration_bounds = array<i64: 2>, scalar_prefetch = 0 : i64, scratch_operands = 0 : i64, tpu.core_type = #tpu.core_type<tc>, window_params = [{transform_indices = @transform_0, window_bounds = array<i64: 8, 32, 256>}, {pipeline_mode = #tpu.pipeline_mode<synchronous>, transform_indices = @transform_1, window_bounds = array<i64: 32, 2>}, {pipeline_mode = #tpu.pipeline_mode<synchronous>, transform_indices = @transform_2, window_bounds = array<i64: 1, 2>}, {pipeline_mode = #tpu.pipeline_mode<synchronous>, transform_indices = @transform_3, window_bounds = array<i64: 2, 32>}, {pipeline_mode = #tpu.pipeline_mode<synchronous>, transform_indices = @transform_4, window_bounds = array<i64: 1, 32>}, {pipeline_mode = #tpu.pipeline_mode<synchronous>, transform_indices = @transform_5, window_bounds = array<i64: 512, 256>}, {transform_indices = @transform_6, window_bounds = array<i64: 1>}, {transform_indices = @transform_7, window_bounds = array<i64: 8, 32, 256>}]} {
    %c0 = arith.constant 0 : index
    %c0_0 = arith.constant 0 : index
    %c0_1 = arith.constant 0 : index
    %0 = vector.load %arg1[%c0, %c0_0, %c0_1] : memref<8x32x256xf32, #tpu.memory_space<vmem>>, vector<8x32x256xf32>
    %cst = arith.constant dense<0.000000e+00> : vector<8x32xf32>
    %1 = vector.multi_reduction <add>, %0, %cst [2] : vector<8x32x256xf32> to vector<8x32xf32>
    %cst_2 = arith.constant 3.906250e-03 : f32
    %2 = vector.broadcast %cst_2 : f32 to vector<8x32xf32>
    %3 = arith.mulf %1, %2 : vector<8x32xf32>
    %c0_3 = arith.constant 0 : index
    %c0_4 = arith.constant 0 : index
    %4 = vector.load %arg2[%c0_3, %c0_4] : memref<32x2xf32, #tpu.memory_space<vmem>>, vector<32x2xf32>
    %cst_5 = arith.constant dense<0.000000e+00> : vector<8x2xf32>
    %5 = tpu.matmul %3, %4, %cst_5 {dimension_numbers = #tpu.dot_dimension_numbers<[1], [0], [0], [1], [0, 0, 1, 1], [], []>} : vector<8x32xf32>, vector<32x2xf32>, vector<8x2xf32> -> vector<8x2xf32>
    %c0_6 = arith.constant 0 : index
    %c0_7 = arith.constant 0 : index
    %6 = vector.load %arg3[%c0_6, %c0_7] : memref<1x2xf32, #tpu.memory_space<vmem>>, vector<1x2xf32>
    %7 = vector.broadcast %6 : vector<1x2xf32> to vector<8x2xf32>
    %8 = arith.addf %5, %7 : vector<8x2xf32>
    %cst_8 = arith.constant 0.000000e+00 : f32
    %9 = vector.broadcast %cst_8 : f32 to vector<8x2xf32>
    %10 = arith.maximumf %8, %9 : vector<8x2xf32>
    %c0_9 = arith.constant 0 : index
    %c0_10 = arith.constant 0 : index
    %11 = vector.load %arg4[%c0_9, %c0_10] : memref<2x32xf32, #tpu.memory_space<vmem>>, vector<2x32xf32>
    %cst_11 = arith.constant dense<0.000000e+00> : vector<8x32xf32>
    %12 = tpu.matmul %10, %11, %cst_11 {dimension_numbers = #tpu.dot_dimension_numbers<[1], [0], [0], [1], [0, 0, 1, 1], [], []>} : vector<8x2xf32>, vector<2x32xf32>, vector<8x32xf32> -> vector<8x32xf32>
    %c0_12 = arith.constant 0 : index
    %c0_13 = arith.constant 0 : index
    %13 = vector.load %arg5[%c0_12, %c0_13] : memref<1x32xf32, #tpu.memory_space<vmem>>, vector<1x32xf32>
    %14 = vector.broadcast %13 : vector<1x32xf32> to vector<8x32xf32>
    %15 = arith.addf %12, %14 : vector<8x32xf32>
    %cst_14 = arith.constant 0.000000e+00 : f32
    %16 = vector.broadcast %cst_14 : f32 to vector<8x32xf32>
    %17 = arith.subf %16, %15 : vector<8x32xf32>
    %18 = math.exp %17 : vector<8x32xf32>
    %cst_15 = arith.constant 1.000000e+00 : f32
    %19 = vector.broadcast %cst_15 : f32 to vector<8x32xf32>
    %20 = arith.addf %19, %18 : vector<8x32xf32>
    %21 = tpu.reciprocal %20 {approx = true} : vector<8x32xf32> -> vector<8x32xf32>
    %22 = vector.shape_cast %21 : vector<8x32xf32> to vector<8x32x1xf32>
    %23 = vector.broadcast %22 : vector<8x32x1xf32> to vector<8x32x256xf32>
    %24 = arith.mulf %0, %23 : vector<8x32x256xf32>
    %cst_16 = arith.constant dense<0xFF800000> : vector<8x256xf32>
    %25 = vector.multi_reduction <maximumf>, %24, %cst_16 [1] : vector<8x32x256xf32> to vector<8x256xf32>
    %cst_17 = arith.constant dense<0.000000e+00> : vector<8x256xf32>
    %26 = vector.multi_reduction <add>, %24, %cst_17 [1] : vector<8x32x256xf32> to vector<8x256xf32>
    %cst_18 = arith.constant 3.125000e-02 : f32
    %27 = vector.broadcast %cst_18 : f32 to vector<8x256xf32>
    %28 = arith.mulf %26, %27 : vector<8x256xf32>
    %29 = tpu.concatenate %25, %28 in 1 : vector<8x256xf32>, vector<8x256xf32> -> vector<8x512xf32>
    %c0_19 = arith.constant 0 : index
    %c0_20 = arith.constant 0 : index
    %30 = vector.load %arg6[%c0_19, %c0_20] : memref<512x256xf32, #tpu.memory_space<vmem>>, vector<512x256xf32>
    %cst_21 = arith.constant dense<0.000000e+00> : vector<8x256xf32>
    %31 = tpu.matmul %29, %30, %cst_21 {dimension_numbers = #tpu.dot_dimension_numbers<[1], [0], [0], [1], [0, 0, 1, 1], [], []>} : vector<8x512xf32>, vector<512x256xf32>, vector<8x256xf32> -> vector<8x256xf32>
    %c0_22 = arith.constant 0 : index
    %32 = memref.load %arg7[%c0_22] : memref<1xf32, #tpu.memory_space<smem>>
    %33 = vector.broadcast %32 : f32 to vector<8x256xf32>
    %34 = arith.addf %31, %33 : vector<8x256xf32>
    %cst_23 = arith.constant 0.000000e+00 : f32
    %35 = vector.broadcast %cst_23 : f32 to vector<8x256xf32>
    %36 = arith.subf %35, %34 : vector<8x256xf32>
    %37 = math.exp %36 : vector<8x256xf32>
    %cst_24 = arith.constant 1.000000e+00 : f32
    %38 = vector.broadcast %cst_24 : f32 to vector<8x256xf32>
    %39 = arith.addf %38, %37 : vector<8x256xf32>
    %40 = tpu.reciprocal %39 {approx = true} : vector<8x256xf32> -> vector<8x256xf32>
    %41 = vector.shape_cast %40 : vector<8x256xf32> to vector<8x1x256xf32>
    %42 = vector.broadcast %41 : vector<8x1x256xf32> to vector<8x32x256xf32>
    %43 = arith.mulf %24, %42 : vector<8x32x256xf32>
    %c0_25 = arith.constant 0 : index
    %c0_26 = arith.constant 0 : index
    %c0_27 = arith.constant 0 : index
    %44 = vector.load %arg8[%c0_25, %c0_26, %c0_27] : memref<8x32x256xf32, #tpu.memory_space<vmem>>, vector<8x32x256xf32>
    tpu.vector_store %arg8[%c0_25, %c0_26, %c0_27], %43 {strides = array<i32>} : memref<8x32x256xf32, #tpu.memory_space<vmem>>, vector<8x32x256xf32>,
    return
  }
  func.func @transform_0(%arg0: i32) -> (i32, i32, i32) {
    %c0_i32 = arith.constant 0 : i32
    %c0_i32_0 = arith.constant 0 : i32
    %c0_i32_1 = arith.constant 0 : i32
    return %arg0, %c0_i32, %c0_i32_0 : i32, i32, i32
  }
  func.func @transform_1(%arg0: i32) -> (i32, i32) {
    %c0_i32 = arith.constant 0 : i32
    %c0_i32_0 = arith.constant 0 : i32
    %c0_i32_1 = arith.constant 0 : i32
    return %c0_i32, %c0_i32_0 : i32, i32
  }
  func.func @transform_2(%arg0: i32) -> (i32, i32) {
    %c0_i32 = arith.constant 0 : i32
    %c0_i32_0 = arith.constant 0 : i32
    %c0_i32_1 = arith.constant 0 : i32
    return %c0_i32, %c0_i32_0 : i32, i32
  }
  func.func @transform_3(%arg0: i32) -> (i32, i32) {
    %c0_i32 = arith.constant 0 : i32
    %c0_i32_0 = arith.constant 0 : i32
    %c0_i32_1 = arith.constant 0 : i32
    return %c0_i32, %c0_i32_0 : i32, i32
  }
  func.func @transform_4(%arg0: i32) -> (i32, i32) {
    %c0_i32 = arith.constant 0 : i32
    %c0_i32_0 = arith.constant 0 : i32
    %c0_i32_1 = arith.constant 0 : i32
    return %c0_i32, %c0_i32_0 : i32, i32
  }
  func.func @transform_5(%arg0: i32) -> (i32, i32) {
    %c0_i32 = arith.constant 0 : i32
    %c0_i32_0 = arith.constant 0 : i32
    %c0_i32_1 = arith.constant 0 : i32
    return %c0_i32, %c0_i32_0 : i32, i32
  }
  func.func @transform_6(%arg0: i32) -> i32 {
    %c0_i32 = arith.constant 0 : i32
    %c0_i32_0 = arith.constant 0 : i32
    return %c0_i32 : i32
  }
  func.func @transform_7(%arg0: i32) -> (i32, i32, i32) {
    %c0_i32 = arith.constant 0 : i32
    %c0_i32_0 = arith.constant 0 : i32
    %c0_i32_1 = arith.constant 0 : i32
    return %arg0, %c0_i32, %c0_i32_0 : i32, i32, i32
  }
}

</mosaic_0001>

<llo_original>
// kernel: tpu_custom_call.1
$region0: #{tpu_custom_call.1}
  #allocation0 [shape = 'u32[]', space=smem, size = 0x4, offset = 0x4, fixed_abs, tag = 'smem constant byte address 0x4 - core index']
  #allocation1 [shape = 'u32[144,128]{1,0:T(1,128)}', space=vmem, size = 0x12000, scoped, tag = 'internal scratch']
  #allocation2 [shape = 'f32[1]{0:T(128)S(6)}', space=smem, size = 0x200, scoped, tag = 'scoped memory for tpu_custom_call.1']
  %s0 = inlined_call_operand.hbm [shape: f32[16,32,256], index: 0, kind: input, shape index: {}]
  %s1 = inlined_call_operand.vmem [shape: f32[32,2], index: 1, kind: input, shape index: {}]
  %s2 = inlined_call_operand.vmem [shape: f32[1,2], index: 2, kind: input, shape index: {}]
  %s3 = inlined_call_operand.vmem [shape: f32[2,32], index: 3, kind: input, shape index: {}]
  %s4 = inlined_call_operand.vmem [shape: f32[1,32], index: 4, kind: input, shape index: {}]
  %s5 = inlined_call_operand.hbm [shape: f32[512,256], index: 5, kind: input, shape index: {}]
  %s6 = inlined_call_operand.<no memory space> [shape: f32[1], index: 6, kind: input, shape index: {}]
  %s7 = inlined_call_operand.hbm [shape: f32[16,32,256], index: 7, kind: output, shape index: {}]
  %s8 = sld [smem:[#allocation0]]
  $region69: #{tpu_custom_call.1} parent=0
    _
  %s10 = ssub.s32 1, %s8
  %s11 = scalar_select 0, %s10, %s8
  %12 = sst [smem:[#allocation2]] %s6
  $region1: #{tpu_custom_call.1} parent=0
    #allocation3 [shape = 'u8[524288]{0}', space=vmem, size = 0x80000, scoped, tag = 'input window, operand 0']
    #allocation4 [shape = 's32[2]{0}', space=sflag, size = 0x8, scoped, tag = 'scoped memory for tpu_custom_call.1']
    #allocation5 [shape = 's32[2]{0}', space=sflag, size = 0x8, scoped, tag = 'scoped memory for tpu_custom_call.1']
    #allocation6 [shape = 'u8[524288]{0}', space=vmem, size = 0x80000, scoped, tag = 'input window, operand 5, single buffered']
    #allocation7 [shape = 's32[1]{0}', space=sflag, size = 0x4, scoped, tag = 'scoped memory for tpu_custom_call.1']
    #allocation8 [shape = 'u8[524288]{0}', space=vmem, size = 0x80000, scoped, tag = 'output window, operand 0']
    %13 = vsyncpa [#allocation4], 0
    %s14 = scalar_lea.sflag [#allocation4], 1
    %15 = vsyncpa %s14, 0
    %16 = vsyncpa [#allocation7], 0
    %17 = vsyncpa [#allocation5], 0
    %s18 = scalar_lea.sflag [#allocation5], 1
    %19 = vsyncpa %s18, 0
    loop: start=0, step=1, limit=4
    $region2: #{tpu_custom_call.1} parent=1 // loop_pre_header
      _
    $region3: #{tpu_custom_call.1} parent=1 // loop_header
      %s21 = sphi 0, %s25
      %p22 = scmp.ge.s32.totalorder %s21, 4
      %s31 = sphi 0, %s33
      %s34 = sphi 0, %s31
      %s35 = sphi 0, %s34
      %s51 = sphi 0, %s35
      %s55 = sphi 0, %s55
      %s57 = sphi 0, %s55
      %s58 = sphi 0, %s57
      %s72 = sphi 0, %s58
      %s76 = sphi 0, %s76
      %s78 = sphi 0, %s76
      %s79 = sphi 0, %s78
      %s93 = sphi 0, %s79
      %s97 = sphi 0, %s97
      %s99 = sphi 0, %s97
      %s100 = sphi 0, %s99
      %s114 = sphi 0, %s100
      %s118 = sphi 0, %s118
      %s120 = sphi 0, %s118
      %s121 = sphi 0, %s120
      %s135 = sphi 0, %s121
      %s139 = sphi 0, %s139
      %s141 = sphi 0, %s139
      %s142 = sphi 0, %s141
      %s156 = sphi 0, %s142
      %s160 = sphi 0, %s160
      %s162 = sphi 0, %s160
      %s163 = sphi 0, %s162
      %s177 = sphi 0, %s163
      %s183 = sphi 0, %s185
      %s186 = sphi 0, %s183
      %s187 = sphi 0, %s186
      %s203 = sphi 0, %s187
    $region4: #{tpu_custom_call.1} parent=1 // loop_header_branch
      %24 = sbr.rel (%p22) target = $region8
    $region5: #{tpu_custom_call.1} parent=1 // loop_body
      %s26 = ssub.s32 %s21, 1
      %s27 = ssub.s32 %s21, 2
      %s28 = sadd.s32 %s21, 1
      %s29 = ssub.s32 %s21, %s28
      %p30 = scmp.eq.s32.totalorder %s29, 0
      %s32 = sadd.s32 %s31, 1
      %s33 = scalar_select %p30, %s31, %s32
      %p36 = pneg %p30
      %p37 = scmp.eq.s32.totalorder %s21, 1
      %p38 = por %p36, %p37
      %p39 = scmp.ne.s32.totalorder %s31, %s34
      %p40 = scmp.eq.s32.totalorder %s21, 0
      %p41 = por %p39, %p40
      %p42 = scmp.ne.s32.totalorder %s31, %s34
      %p43 = scmp.eq.s32.totalorder %s26, 1
      %p44 = por %p42, %p43
      %p45 = scmp.ne.s32.totalorder %s34, %s35
      %p46 = scmp.eq.s32.totalorder %s26, 0
      %p47 = por %p45, %p46
      %p48 = scmp.ne.s32.totalorder %s34, %s35
      %p49 = scmp.eq.s32.totalorder %s27, 1
      %p50 = por %p48, %p49
      %p52 = scmp.ne.s32.totalorder %s35, %s51
      %p53 = scmp.eq.s32.totalorder %s27, 0
      %p54 = por %p52, %p53
      %s56 = sadd.s32 %s55, 1
      %p59 = scmp.eq.s32.totalorder %s21, 1
      %p60 = scmp.ne.s32.totalorder %s55, %s57
      %p61 = scmp.eq.s32.totalorder %s21, 0
      %p62 = por %p60, %p61
      %p63 = scmp.ne.s32.totalorder %s55, %s57
      %p64 = scmp.eq.s32.totalorder %s26, 1
      %p65 = por %p63, %p64
      %p66 = scmp.ne.s32.totalorder %s57, %s58
      %p67 = scmp.eq.s32.totalorder %s26, 0
      %p68 = por %p66, %p67
      %p69 = scmp.ne.s32.totalorder %s57, %s58
      %p70 = scmp.eq.s32.totalorder %s27, 1
      %p71 = por %p69, %p70
      %p73 = scmp.ne.s32.totalorder %s58, %s72
      %p74 = scmp.eq.s32.totalorder %s27, 0
      %p75 = por %p73, %p74
      %s77 = sadd.s32 %s76, 1
      %p80 = scmp.eq.s32.totalorder %s21, 1
      %p81 = scmp.ne.s32.totalorder %s76, %s78
      %p82 = scmp.eq.s32.totalorder %s21, 0
      %p83 = por %p81, %p82
      %p84 = scmp.ne.s32.totalorder %s76, %s78
      %p85 = scmp.eq.s32.totalorder %s26, 1
      %p86 = por %p84, %p85
      %p87 = scmp.ne.s32.totalorder %s78, %s79
      %p88 = scmp.eq.s32.totalorder %s26, 0
      %p89 = por %p87, %p88
      %p90 = scmp.ne.s32.totalorder %s78, %s79
      %p91 = scmp.eq.s32.totalorder %s27, 1
      %p92 = por %p90, %p91
      %p94 = scmp.ne.s32.totalorder %s79, %s93
      %p95 = scmp.eq.s32.totalorder %s27, 0
      %p96 = por %p94, %p95
      %s98 = sadd.s32 %s97, 1
      %p101 = scmp.eq.s32.totalorder %s21, 1
      %p102 = scmp.ne.s32.totalorder %s97, %s99
      %p103 = scmp.eq.s32.totalorder %s21, 0
      %p104 = por %p102, %p103
      %p105 = scmp.ne.s32.totalorder %s97, %s99
      %p106 = scmp.eq.s32.totalorder %s26, 1
      %p107 = por %p105, %p106
      %p108 = scmp.ne.s32.totalorder %s99, %s100
      %p109 = scmp.eq.s32.totalorder %s26, 0
      %p110 = por %p108, %p109
      %p111 = scmp.ne.s32.totalorder %s99, %s100
      %p112 = scmp.eq.s32.totalorder %s27, 1
      %p113 = por %p111, %p112
      %p115 = scmp.ne.s32.totalorder %s100, %s114
      %p116 = scmp.eq.s32.totalorder %s27, 0
      %p117 = por %p115, %p116
      %s119 = sadd.s32 %s118, 1
      %p122 = scmp.eq.s32.totalorder %s21, 1
      %p123 = scmp.ne.s32.totalorder %s118, %s120
      %p124 = scmp.eq.s32.totalorder %s21, 0
      %p125 = por %p123, %p124
      %p126 = scmp.ne.s32.totalorder %s118, %s120
      %p127 = scmp.eq.s32.totalorder %s26, 1
      %p128 = por %p126, %p127
      %p129 = scmp.ne.s32.totalorder %s120, %s121
      %p130 = scmp.eq.s32.totalorder %s26, 0
      %p131 = por %p129, %p130
      %p132 = scmp.ne.s32.totalorder %s120, %s121
      %p133 = scmp.eq.s32.totalorder %s27, 1
      %p134 = por %p132, %p133
      %p136 = scmp.ne.s32.totalorder %s121, %s135
      %p137 = scmp.eq.s32.totalorder %s27, 0
      %p138 = por %p136, %p137
      %s140 = sadd.s32 %s139, 1
      %p143 = scmp.eq.s32.totalorder %s21, 1
      %p144 = scmp.ne.s32.totalorder %s139, %s141
      %p145 = scmp.eq.s32.totalorder %s21, 0
      %p146 = por %p144, %p145
      %p147 = scmp.ne.s32.totalorder %s139, %s141
      %p148 = scmp.eq.s32.totalorder %s26, 1
      %p149 = por %p147, %p148
      %p150 = scmp.ne.s32.totalorder %s141, %s142
      %p151 = scmp.eq.s32.totalorder %s26, 0
      %p152 = por %p150, %p151
      %p153 = scmp.ne.s32.totalorder %s141, %s142
      %p154 = scmp.eq.s32.totalorder %s27, 1
      %p155 = por %p153, %p154
      %p157 = scmp.ne.s32.totalorder %s142, %s156
      %p158 = scmp.eq.s32.totalorder %s27, 0
      %p159 = por %p157, %p158
      %s161 = sadd.s32 %s160, 1
      %p164 = scmp.eq.s32.totalorder %s21, 1
      %p165 = scmp.ne.s32.totalorder %s160, %s162
      %p166 = scmp.eq.s32.totalorder %s21, 0
      %p167 = por %p165, %p166
      %p168 = scmp.ne.s32.totalorder %s160, %s162
      %p169 = scmp.eq.s32.totalorder %s26, 1
      %p170 = por %p168, %p169
      %p171 = scmp.ne.s32.totalorder %s162, %s163
      %p172 = scmp.eq.s32.totalorder %s26, 0
      %p173 = por %p171, %p172
      %p174 = scmp.ne.s32.totalorder %s162, %s163
      %p175 = scmp.eq.s32.totalorder %s27, 1
      %p176 = por %p174, %p175
      %p178 = scmp.ne.s32.totalorder %s163, %s177
      %p179 = scmp.eq.s32.totalorder %s27, 0
      %p180 = por %p178, %p179
      %s181 = ssub.s32 %s21, %s28
      %p182 = scmp.eq.s32.totalorder %s181, 0
      %s184 = sadd.s32 %s183, 1
      %s185 = scalar_select %p182, %s183, %s184
      %p188 = pneg %p182
      %p189 = scmp.eq.s32.totalorder %s21, 1
      %p190 = por %p188, %p189
      %p191 = scmp.ne.s32.totalorder %s183, %s186
      %p192 = scmp.eq.s32.totalorder %s21, 0
      %p193 = por %p191, %p192
      %p194 = scmp.ne.s32.totalorder %s183, %s186
      %p195 = scmp.eq.s32.totalorder %s26, 1
      %p196 = por %p194, %p195
      %p197 = scmp.ne.s32.totalorder %s186, %s187
      %p198 = scmp.eq.s32.totalorder %s26, 0
      %p199 = por %p197, %p198
      %p200 = scmp.ne.s32.totalorder %s186, %s187
      %p201 = scmp.eq.s32.totalorder %s27, 1
      %p202 = por %p200, %p201
      %p204 = scmp.ne.s32.totalorder %s187, %s203
      %p205 = scmp.eq.s32.totalorder %s27, 0
      %p206 = por %p204, %p205
      %p207 = scmp.le.s32.totalorder 1, %s21
      %p208 = scmp.lt.s32.totalorder %s21, 3
      %p209 = pnand %p207, %p208
      %p210 = pneg %p209
      // Predicated region
      $region9: #{tpu_custom_call.1} parent=5 // pred_check
        _
      $region10: #{tpu_custom_call.1} parent=5 // pred_check_branch
        %212 = sbr.rel (%p209) target = $region12
      $region11: #{tpu_custom_call.1} parent=5 // pred_region
        %s213 = ssub.s32 %s21, 1
        // Predicated region
        $region13: #{tpu_custom_call.1} parent=11 // pred_check
          %p214 = pneg %p68
        $region14: #{tpu_custom_call.1} parent=11 // pred_check_branch
          %216 = sbr.rel (%p214) target = $region16
        $region15: #{tpu_custom_call.1} parent=11 // pred_region
          _
        $region16: #{tpu_custom_call.1} parent=11 // pred_fallthru
          _
        // Predicated region
        $region17: #{tpu_custom_call.1} parent=11 // pred_check
          %p217 = pneg %p89
        $region18: #{tpu_custom_call.1} parent=11 // pred_check_branch
          %219 = sbr.rel (%p217) target = $region20
        $region19: #{tpu_custom_call.1} parent=11 // pred_region
          _
        $region20: #{tpu_custom_call.1} parent=11 // pred_fallthru
          _
        // Predicated region
        $region21: #{tpu_custom_call.1} parent=11 // pred_check
          %p220 = pneg %p110
        $region22: #{tpu_custom_call.1} parent=11 // pred_check_branch
          %222 = sbr.rel (%p220) target = $region24
        $region23: #{tpu_custom_call.1} parent=11 // pred_region
          _
        $region24: #{tpu_custom_call.1} parent=11 // pred_fallthru
          _
        // Predicated region
        $region25: #{tpu_custom_call.1} parent=11 // pred_check
          %p223 = pneg %p131
        $region26: #{tpu_custom_call.1} parent=11 // pred_check_branch
          %225 = sbr.rel (%p223) target = $region28
        $region27: #{tpu_custom_call.1} parent=11 // pred_region
          _
        $region28: #{tpu_custom_call.1} parent=11 // pred_fallthru
          _
        // Predicated region
        $region29: #{tpu_custom_call.1} parent=11 // pred_check
          %p226 = pneg %p152
        $region30: #{tpu_custom_call.1} parent=11 // pred_check_branch
          %228 = sbr.rel (%p226) target = $region32
        $region31: #{tpu_custom_call.1} parent=11 // pred_region
          %s230 = ssub.s32 16384, 16384
          %231 = vsyncadd [#allocation7], %s230
          %s232 = sshll.u32 [#allocation6], 4
          %s233 = int_to_ptr.vmem [resolvable:$true] %s232
          %238 = dma.hbm_to_vmem [thread:$0]  %s5, 16384, %s233, [#allocation7], 256, 256, 16
        $region32: #{tpu_custom_call.1} parent=11 // pred_fallthru
          _
        // Predicated region
        $region33: #{tpu_custom_call.1} parent=11 // pred_check
          %p239 = pneg %p173
        $region34: #{tpu_custom_call.1} parent=11 // pred_check_branch
          %241 = sbr.rel (%p239) target = $region36
        $region35: #{tpu_custom_call.1} parent=11 // pred_region
          _
        $region36: #{tpu_custom_call.1} parent=11 // pred_fallthru
          _
      $region12: #{tpu_custom_call.1} parent=5 // pred_fallthru
        _
      %p242 = scmp.lt.s32.totalorder %s21, 2
      // Predicated region
      $region37: #{tpu_custom_call.1} parent=5 // pred_check
        %p243 = pneg %p242
      $region38: #{tpu_custom_call.1} parent=5 // pred_check_branch
        %245 = sbr.rel (%p243) target = $region40
      $region39: #{tpu_custom_call.1} parent=5 // pred_region
        // Predicated region
        $region41: #{tpu_custom_call.1} parent=39 // pred_check
          %p246 = pneg %p41
        $region42: #{tpu_custom_call.1} parent=39 // pred_check_branch
          %248 = sbr.rel (%p246) target = $region44
        $region43: #{tpu_custom_call.1} parent=39 // pred_region
          %s249 = sand.u32 %s31, 1
          %s250 = scalar_lea.sflag [#allocation4], %s249
          %s251 = sand.u32 %s31, 1
          %s252 = smul.addr %s251, 512
          %s253 = scalar_lea.vmem [#allocation3], %s252
          %s254 = smul.u32 8, %s21
          %s256 = ssub.s32 8192, 8192
          %257 = vsyncadd %s250, %s256
          %s258 = smul.addr %s254, 8
          %s259 = smul.addr %s258, 128
          %s260 = scalar_lea.hbm %s0, %s259
          %s261 = sshll.u32 %s253, 4
          %s262 = int_to_ptr.vmem [resolvable:$true] %s261
          %267 = dma.hbm_to_vmem [thread:$0]  %s260, 8192, %s262, %s250, 256, 256, 16
        $region44: #{tpu_custom_call.1} parent=39 // pred_fallthru
          _
      $region40: #{tpu_custom_call.1} parent=5 // pred_fallthru
        _
      %p268 = scmp.le.s32.totalorder 1, %s21
      %p269 = scmp.lt.s32.totalorder %s21, 3
      %p270 = pnand %p268, %p269
      %p271 = pneg %p270
      // Predicated region
      $region45: #{tpu_custom_call.1} parent=5 // pred_check
        _
      $region46: #{tpu_custom_call.1} parent=5 // pred_check_branch
        %273 = sbr.rel (%p270) target = $region48
      $region47: #{tpu_custom_call.1} parent=5 // pred_region
        %s274 = ssub.s32 %s21, 1
        %s275 = sand.u32 %s34, 1
        %s276 = scalar_lea.sflag [#allocation4], %s275
        %s277 = sand.u32 %s34, 1
        %s278 = smul.addr %s277, 512
        %s279 = scalar_lea.vmem [#allocation3], %s278
        // Predicated region
        $region49: #{tpu_custom_call.1} parent=47 // pred_check
          %p280 = pneg %p47
        $region50: #{tpu_custom_call.1} parent=47 // pred_check_branch
          %282 = sbr.rel (%p280) target = $region52
        $region51: #{tpu_custom_call.1} parent=47 // pred_region
          %283 = dma.done %s276, 8192
        $region52: #{tpu_custom_call.1} parent=47 // pred_fallthru
          _
        // Predicated region
        $region53: #{tpu_custom_call.1} parent=47 // pred_check
          %p284 = pneg %p152
        $region54: #{tpu_custom_call.1} parent=47 // pred_check_branch
          %286 = sbr.rel (%p284) target = $region56
        $region55: #{tpu_custom_call.1} parent=47 // pred_region
          %287 = dma.done [#allocation7], 16384
        $region56: #{tpu_custom_call.1} parent=47 // pred_fallthru
          _
        %s288 = sand.u32 %s34, 1
        %s289 = scalar_lea.sflag [#allocation4], %s288
        %s290 = sand.u32 %s34, 1
        %s291 = smul.addr %s290, 512
        %s292 = scalar_lea.vmem [#allocation3], %s291
        %p293 = pneg %p47
        %p294 = pneg %p44
        %p295 = pneg %p68
        %p296 = pneg %p65
        %p297 = pneg %p89
        %p298 = pneg %p86
        %p299 = pneg %p110
        %p300 = pneg %p107
        %p301 = pneg %p131
        %p302 = pneg %p128
        %p303 = pneg %p152
        %p304 = pneg %p149
        %p305 = pneg %p173
        %p306 = pneg %p170
        %p307 = pneg %p199
        %p308 = pneg %p196
        %s309 = sand.u32 %s186, 1
        %s310 = scalar_lea.sflag [#allocation5], %s309
        %s311 = sand.u32 %s186, 1
        %s312 = smul.addr %s311, 512
        %s313 = scalar_lea.vmem [#allocation8], %s312
        %s314 = smul.u32 8, %s26
        %s315 = smul.u32 8, %s26
        %v316 = vld [vmem:[%s279] sm:$0xff]
        %v317 = vld [vmem:[%s279 + $0x8] sm:$0xff]
        %v318 = vld [vmem:[%s279 + $0x10] sm:$0xff]
        %v319 = vld [vmem:[%s279 + $0x18] sm:$0xff]
        %v320 = vld [vmem:[%s279 + $0x20] sm:$0xff]
        %v321 = vld [vmem:[%s279 + $0x28] sm:$0xff]
        %v322 = vld [vmem:[%s279 + $0x30] sm:$0xff]
        %v323 = vld [vmem:[%s279 + $0x38] sm:$0xff]
        %v324 = vld [vmem:[%s279 + $0x40] sm:$0xff]
        %v325 = vld [vmem:[%s279 + $0x48] sm:$0xff]
        %v326 = vld [vmem:[%s279 + $0x50] sm:$0xff]
        %v327 = vld [vmem:[%s279 + $0x58] sm:$0xff]
        %v328 = vld [vmem:[%s279 + $0x60] sm:$0xff]
        %v329 = vld [vmem:[%s279 + $0x68] sm:$0xff]
        %v330 = vld [vmem:[%s279 + $0x70] sm:$0xff]
        %v331 = vld [vmem:[%s279 + $0x78] sm:$0xff]
        %v332 = vld [vmem:[%s279 + $0x80] sm:$0xff]
        %v333 = vld [vmem:[%s279 + $0x88] sm:$0xff]
        %v334 = vld [vmem:[%s279 + $0x90] sm:$0xff]
        %v335 = vld [vmem:[%s279 + $0x98] sm:$0xff]
        %v336 = vld [vmem:[%s279 + $0xa0] sm:$0xff]
        %v337 = vld [vmem:[%s279 + $0xa8] sm:$0xff]
        %v338 = vld [vmem:[%s279 + $0xb0] sm:$0xff]
        %v339 = vld [vmem:[%s279 + $0xb8] sm:$0xff]
        %v340 = vld [vmem:[%s279 + $0xc0] sm:$0xff]
        %v341 = vld [vmem:[%s279 + $0xc8] sm:$0xff]
        %v342 = vld [vmem:[%s279 + $0xd0] sm:$0xff]
        %v343 = vld [vmem:[%s279 + $0xd8] sm:$0xff]
        %v344 = vld [vmem:[%s279 + $0xe0] sm:$0xff]
        %v345 = vld [vmem:[%s279 + $0xe8] sm:$0xff]
        %v346 = vld [vmem:[%s279 + $0xf0] sm:$0xff]
        %v347 = vld [vmem:[%s279 + $0xf8] sm:$0xff]
        %v348 = vld [vmem:[%s279 + $0x100] sm:$0xff]
        %v349 = vld [vmem:[%s279 + $0x108] sm:$0xff]
        %v350 = vld [vmem:[%s279 + $0x110] sm:$0xff]
        %v351 = vld [vmem:[%s279 + $0x118] sm:$0xff]
        %v352 = vld [vmem:[%s279 + $0x120] sm:$0xff]
        %v353 = vld [vmem:[%s279 + $0x128] sm:$0xff]
        %v354 = vld [vmem:[%s279 + $0x130] sm:$0xff]
        %v355 = vld [vmem:[%s279 + $0x138] sm:$0xff]
        %v356 = vld [vmem:[%s279 + $0x140] sm:$0xff]
        %v357 = vld [vmem:[%s279 + $0x148] sm:$0xff]
        %v358 = vld [vmem:[%s279 + $0x150] sm:$0xff]
        %v359 = vld [vmem:[%s279 + $0x158] sm:$0xff]
        %v360 = vld [vmem:[%s279 + $0x160] sm:$0xff]
        %v361 = vld [vmem:[%s279 + $0x168] sm:$0xff]
        %v362 = vld [vmem:[%s279 + $0x170] sm:$0xff]
        %v363 = vld [vmem:[%s279 + $0x178] sm:$0xff]
        %v364 = vld [vmem:[%s279 + $0x180] sm:$0xff]
        %v365 = vld [vmem:[%s279 + $0x188] sm:$0xff]
        %v366 = vld [vmem:[%s279 + $0x190] sm:$0xff]
        %v367 = vld [vmem:[%s279 + $0x198] sm:$0xff]
        %v368 = vld [vmem:[%s279 + $0x1a0] sm:$0xff]
        %v369 = vld [vmem:[%s279 + $0x1a8] sm:$0xff]
        %v370 = vld [vmem:[%s279 + $0x1b0] sm:$0xff]
        %v371 = vld [vmem:[%s279 + $0x1b8] sm:$0xff]
        %v372 = vld [vmem:[%s279 + $0x1c0] sm:$0xff]
        %v373 = vld [vmem:[%s279 + $0x1c8] sm:$0xff]
        %v374 = vld [vmem:[%s279 + $0x1d0] sm:$0xff]
        %v375 = vld [vmem:[%s279 + $0x1d8] sm:$0xff]
        %v376 = vld [vmem:[%s279 + $0x1e0] sm:$0xff]
        %v377 = vld [vmem:[%s279 + $0x1e8] sm:$0xff]
        %v378 = vld [vmem:[%s279 + $0x1f0] sm:$0xff]
        %v379 = vld [vmem:[%s279 + $0x1f8] sm:$0xff]
        %v380 = vadd.f32 %v316, %v317
        %381 = vadd.xlane.f32.xlu0 %v380
        %v382 = vpop.xlane.xlu0 %381
        %v383 = vadd.f32 %v318, %v319
        %384 = vadd.xlane.f32.xlu0 %v383
        %v385 = vpop.xlane.xlu0 %384
        %v386 = vadd.f32 %v320, %v321
        %387 = vadd.xlane.f32.xlu0 %v386
        %v388 = vpop.xlane.xlu0 %387
        %v389 = vadd.f32 %v322, %v323
        %390 = vadd.xlane.f32.xlu0 %v389
        %v391 = vpop.xlane.xlu0 %390
        %v392 = vadd.f32 %v324, %v325
        %393 = vadd.xlane.f32.xlu0 %v392
        %v394 = vpop.xlane.xlu0 %393
        %v395 = vadd.f32 %v326, %v327
        %396 = vadd.xlane.f32.xlu0 %v395
        %v397 = vpop.xlane.xlu0 %396
        %v398 = vadd.f32 %v328, %v329
        %399 = vadd.xlane.f32.xlu0 %v398
        %v400 = vpop.xlane.xlu0 %399
        %v401 = vadd.f32 %v330, %v331
        %402 = vadd.xlane.f32.xlu0 %v401
        %v403 = vpop.xlane.xlu0 %402
        %v404 = vadd.f32 %v332, %v333
        %405 = vadd.xlane.f32.xlu0 %v404
        %v406 = vpop.xlane.xlu0 %405
        %v407 = vadd.f32 %v334, %v335
        %408 = vadd.xlane.f32.xlu0 %v407
        %v409 = vpop.xlane.xlu0 %408
        %v410 = vadd.f32 %v336, %v337
        %411 = vadd.xlane.f32.xlu0 %v410
        %v412 = vpop.xlane.xlu0 %411
        %v413 = vadd.f32 %v338, %v339
        %414 = vadd.xlane.f32.xlu0 %v413
        %v415 = vpop.xlane.xlu0 %414
        %v416 = vadd.f32 %v340, %v341
        %417 = vadd.xlane.f32.xlu0 %v416
        %v418 = vpop.xlane.xlu0 %417
        %v419 = vadd.f32 %v342, %v343
        %420 = vadd.xlane.f32.xlu0 %v419
        %v421 = vpop.xlane.xlu0 %420
        %v422 = vadd.f32 %v344, %v345
        %423 = vadd.xlane.f32.xlu0 %v422
        %v424 = vpop.xlane.xlu0 %423
        %v425 = vadd.f32 %v346, %v347
        %426 = vadd.xlane.f32.xlu0 %v425
        %v427 = vpop.xlane.xlu0 %426
        %v428 = vadd.f32 %v348, %v349
        %429 = vadd.xlane.f32.xlu0 %v428
        %v430 = vpop.xlane.xlu0 %429
        %v431 = vadd.f32 %v350, %v351
        %432 = vadd.xlane.f32.xlu0 %v431
        %v433 = vpop.xlane.xlu0 %432
        %v434 = vadd.f32 %v352, %v353
        %435 = vadd.xlane.f32.xlu0 %v434
        %v436 = vpop.xlane.xlu0 %435
        %v437 = vadd.f32 %v354, %v355
        %438 = vadd.xlane.f32.xlu0 %v437
        %v439 = vpop.xlane.xlu0 %438
        %v440 = vadd.f32 %v356, %v357
        %441 = vadd.xlane.f32.xlu0 %v440
        %v442 = vpop.xlane.xlu0 %441
        %v443 = vadd.f32 %v358, %v359
        %444 = vadd.xlane.f32.xlu0 %v443
        %v445 = vpop.xlane.xlu0 %444
        %v446 = vadd.f32 %v360, %v361
        %447 = vadd.xlane.f32.xlu0 %v446
        %v448 = vpop.xlane.xlu0 %447
        %v449 = vadd.f32 %v362, %v363
        %450 = vadd.xlane.f32.xlu0 %v449
        %v451 = vpop.xlane.xlu0 %450
        %v452 = vadd.f32 %v364, %v365
        %453 = vadd.xlane.f32.xlu0 %v452
        %v454 = vpop.xlane.xlu0 %453
        %v455 = vadd.f32 %v366, %v367
        %456 = vadd.xlane.f32.xlu0 %v455
        %v457 = vpop.xlane.xlu0 %456
        %v458 = vadd.f32 %v368, %v369
        %459 = vadd.xlane.f32.xlu0 %v458
        %v460 = vpop.xlane.xlu0 %459
        %v461 = vadd.f32 %v370, %v371
        %462 = vadd.xlane.f32.xlu0 %v461
        %v463 = vpop.xlane.xlu0 %462
        %v464 = vadd.f32 %v372, %v373
        %465 = vadd.xlane.f32.xlu0 %v464
        %v466 = vpop.xlane.xlu0 %465
        %v467 = vadd.f32 %v374, %v375
        %468 = vadd.xlane.f32.xlu0 %v467
        %v469 = vpop.xlane.xlu0 %468
        %v470 = vadd.f32 %v376, %v377
        %471 = vadd.xlane.f32.xlu0 %v470
        %v472 = vpop.xlane.xlu0 %471
        %v473 = vadd.f32 %v378, %v379
        %474 = vadd.xlane.f32.xlu0 %v473
        %v475 = vpop.xlane.xlu0 %474
        %v476 = vmul.f32 %v382, 0.00390625
        %v477 = vmul.f32 %v385, 0.00390625
        %v478 = vmul.f32 %v388, 0.00390625
        %v479 = vmul.f32 %v391, 0.00390625
        %v480 = vmul.f32 %v394, 0.00390625
        %v481 = vmul.f32 %v397, 0.00390625
        %v482 = vmul.f32 %v400, 0.00390625
        %v483 = vmul.f32 %v403, 0.00390625
        %v484 = vmul.f32 %v406, 0.00390625
        %v485 = vmul.f32 %v409, 0.00390625
        %v486 = vmul.f32 %v412, 0.00390625
        %v487 = vmul.f32 %v415, 0.00390625
        %v488 = vmul.f32 %v418, 0.00390625
        %v489 = vmul.f32 %v421, 0.00390625
        %v490 = vmul.f32 %v424, 0.00390625
        %v491 = vmul.f32 %v427, 0.00390625
        %v492 = vmul.f32 %v430, 0.00390625
        %v493 = vmul.f32 %v433, 0.00390625
        %v494 = vmul.f32 %v436, 0.00390625
        %v495 = vmul.f32 %v439, 0.00390625
        %v496 = vmul.f32 %v442, 0.00390625
        %v497 = vmul.f32 %v445, 0.00390625
        %v498 = vmul.f32 %v448, 0.00390625
        %v499 = vmul.f32 %v451, 0.00390625
        %v500 = vmul.f32 %v454, 0.00390625
        %v501 = vmul.f32 %v457, 0.00390625
        %v502 = vmul.f32 %v460, 0.00390625
        %v503 = vmul.f32 %v463, 0.00390625
        %v504 = vmul.f32 %v466, 0.00390625
        %v505 = vmul.f32 %v469, 0.00390625
        %v506 = vmul.f32 %v472, 0.00390625
        %v507 = vmul.f32 %v475, 0.00390625
        %v508 = vld [vmem:[%s1] sm:$0xff]
        %v509 = vld [vmem:[%s1 + $0x8] sm:$0xff]
        %v510 = vld [vmem:[%s1 + $0x10] sm:$0xff]
        %v511 = vld [vmem:[%s1 + $0x18] sm:$0xff]
        %v512 = vld [vmem:[%s2] sm:$0x1]
        %v514 = vlaneseq
        %v515 = vshrl.u32 %v514, 7
        %v516 = vsub.s32 0, %v515
        %v517 = vrot.slane %v512, %v516
        %v551 = vlaneseq
        %v552 = vand.u32 %v551, 127
        %v553 = vlaneseq
        %v554 = vshrl.u32 %v553, 7
        %v555 = vsub.s32 %v552, %v554
        %v556 = vrot.slane %v476, %v555
        %v557 = vadd.s32 %v552, 4294967288
        %v558 = vlaneseq
        %v559 = vshrl.u32 %v558, 7
        %v560 = vsub.s32 %v557, %v559
        %v561 = vrot.slane %v477, %v560
        %vm562 = vcmask 130112
        %v563 = vsel %vm562, %v561, %v556
        %v564 = vadd.s32 %v552, 4294967280
        %v565 = vlaneseq
        %v566 = vshrl.u32 %v565, 7
        %v567 = vsub.s32 %v564, %v566
        %v568 = vrot.slane %v478, %v567
        %vm569 = vcmask 195712
        %v570 = vsel %vm569, %v568, %v563
        %v571 = vadd.s32 %v552, 4294967272
        %v572 = vlaneseq
        %v573 = vshrl.u32 %v572, 7
        %v574 = vsub.s32 %v571, %v573
        %v575 = vrot.slane %v479, %v574
        %vm576 = vcmask 261312
        %v577 = vsel %vm576, %v575, %v570
        %v578 = vlaneseq
        %v579 = vshrl.u32 %v578, 7
        %v580 = vsub.s32 %v552, %v579
        %v581 = vrot.slane %v480, %v580
        %v582 = vlaneseq
        %v583 = vshrl.u32 %v582, 7
        %v584 = vsub.s32 %v557, %v583
        %v585 = vrot.slane %v481, %v584
        %v586 = vsel %vm562, %v585, %v581
        %v587 = vlaneseq
        %v588 = vshrl.u32 %v587, 7
        %v589 = vsub.s32 %v564, %v588
        %v590 = vrot.slane %v482, %v589
        %v591 = vsel %vm569, %v590, %v586
        %v592 = vlaneseq
        %v593 = vshrl.u32 %v592, 7
        %v594 = vsub.s32 %v571, %v593
        %v595 = vrot.slane %v483, %v594
        %v596 = vsel %vm576, %v595, %v591
        %v597 = vlaneseq
        %v598 = vshrl.u32 %v597, 7
        %v599 = vsub.s32 %v552, %v598
        %v600 = vrot.slane %v484, %v599
        %v601 = vlaneseq
        %v602 = vshrl.u32 %v601, 7
        %v603 = vsub.s32 %v557, %v602
        %v604 = vrot.slane %v485, %v603
        %v605 = vsel %vm562, %v604, %v600
        %v606 = vlaneseq
        %v607 = vshrl.u32 %v606, 7
        %v608 = vsub.s32 %v564, %v607
        %v609 = vrot.slane %v486, %v608
        %v610 = vsel %vm569, %v609, %v605
        %v611 = vlaneseq
        %v612 = vshrl.u32 %v611, 7
        %v613 = vsub.s32 %v571, %v612
        %v614 = vrot.slane %v487, %v613
        %v615 = vsel %vm576, %v614, %v610
        %v616 = vlaneseq
        %v617 = vshrl.u32 %v616, 7
        %v618 = vsub.s32 %v552, %v617
        %v619 = vrot.slane %v488, %v618
        %v620 = vlaneseq
        %v621 = vshrl.u32 %v620, 7
        %v622 = vsub.s32 %v557, %v621
        %v623 = vrot.slane %v489, %v622
        %v624 = vsel %vm562, %v623, %v619
        %v625 = vlaneseq
        %v626 = vshrl.u32 %v625, 7
        %v627 = vsub.s32 %v564, %v626
        %v628 = vrot.slane %v490, %v627
        %v629 = vsel %vm569, %v628, %v624
        %v630 = vlaneseq
        %v631 = vshrl.u32 %v630, 7
        %v632 = vsub.s32 %v571, %v631
        %v633 = vrot.slane %v491, %v632
        %v634 = vsel %vm576, %v633, %v629
        %v635 = vlaneseq
        %v636 = vshrl.u32 %v635, 7
        %v637 = vsub.s32 %v552, %v636
        %v638 = vrot.slane %v492, %v637
        %v639 = vlaneseq
        %v640 = vshrl.u32 %v639, 7
        %v641 = vsub.s32 %v557, %v640
        %v642 = vrot.slane %v493, %v641
        %v643 = vsel %vm562, %v642, %v638
        %v644 = vlaneseq
        %v645 = vshrl.u32 %v644, 7
        %v646 = vsub.s32 %v564, %v645
        %v647 = vrot.slane %v494, %v646
        %v648 = vsel %vm569, %v647, %v643
        %v649 = vlaneseq
        %v650 = vshrl.u32 %v649, 7
        %v651 = vsub.s32 %v571, %v650
        %v652 = vrot.slane %v495, %v651
        %v653 = vsel %vm576, %v652, %v648
        %v654 = vlaneseq
        %v655 = vshrl.u32 %v654, 7
        %v656 = vsub.s32 %v552, %v655
        %v657 = vrot.slane %v496, %v656
        %v658 = vlaneseq
        %v659 = vshrl.u32 %v658, 7
        %v660 = vsub.s32 %v557, %v659
        %v661 = vrot.slane %v497, %v660
        %v662 = vsel %vm562, %v661, %v657
        %v663 = vlaneseq
        %v664 = vshrl.u32 %v663, 7
        %v665 = vsub.s32 %v564, %v664
        %v666 = vrot.slane %v498, %v665
        %v667 = vsel %vm569, %v666, %v662
        %v668 = vlaneseq
        %v669 = vshrl.u32 %v668, 7
        %v670 = vsub.s32 %v571, %v669
        %v671 = vrot.slane %v499, %v670
        %v672 = vsel %vm576, %v671, %v667
        %v673 = vlaneseq
        %v674 = vshrl.u32 %v673, 7
        %v675 = vsub.s32 %v552, %v674
        %v676 = vrot.slane %v500, %v675
        %v677 = vlaneseq
        %v678 = vshrl.u32 %v677, 7
        %v679 = vsub.s32 %v557, %v678
        %v680 = vrot.slane %v501, %v679
        %v681 = vsel %vm562, %v680, %v676
        %v682 = vlaneseq
        %v683 = vshrl.u32 %v682, 7
        %v684 = vsub.s32 %v564, %v683
        %v685 = vrot.slane %v502, %v684
        %v686 = vsel %vm569, %v685, %v681
        %v687 = vlaneseq
        %v688 = vshrl.u32 %v687, 7
        %v689 = vsub.s32 %v571, %v688
        %v690 = vrot.slane %v503, %v689
        %v691 = vsel %vm576, %v690, %v686
        %v692 = vlaneseq
        %v693 = vshrl.u32 %v692, 7
        %v694 = vsub.s32 %v552, %v693
        %v695 = vrot.slane %v504, %v694
        %v696 = vlaneseq
        %v697 = vshrl.u32 %v696, 7
        %v698 = vsub.s32 %v557, %v697
        %v699 = vrot.slane %v505, %v698
        %v700 = vsel %vm562, %v699, %v695
        %v701 = vlaneseq
        %v702 = vshrl.u32 %v701, 7
        %v703 = vsub.s32 %v564, %v702
        %v704 = vrot.slane %v506, %v703
        %v705 = vsel %vm569, %v704, %v700
        %v706 = vlaneseq
        %v707 = vshrl.u32 %v706, 7
        %v708 = vsub.s32 %v571, %v707
        %v709 = vrot.slane %v507, %v708
        %v710 = vsel %vm576, %v709, %v705
        %vm711 = vcmask 1041409
        %v712 = vsel %vm711, %v596, %v577
        %vm713 = vcmask 1042434
        %v714 = vsel %vm713, %v615, %v712
        %vm715 = vcmask 1043459
        %v716 = vsel %vm715, %v634, %v714
        %vm717 = vcmask 1044484
        %v718 = vsel %vm717, %v653, %v716
        %vm719 = vcmask 1045509
        %v720 = vsel %vm719, %v672, %v718
        %vm721 = vcmask 1046534
        %v722 = vsel %vm721, %v691, %v720
        %vm723 = vcmask 1047559
        %v724 = vsel %vm723, %v710, %v722
        %vm725 = vcmask 261120
        %v726 = vsel %vm725, %v724, 0
        %728 = vmatprep.subr.mxu0 0.0
        %729 = vmatpush1.msra.mxu0 0.0
        %730 = vmatprep.subr.mxu0 0.0
        %731 = vmatpush1.msra.mxu0 0.0
        %732 = vmatprep.subr.mxu0 0.0
        %733 = vmatpush1.msra.mxu0 0.0
        %734 = vmatprep.subr.mxu0 0.0
        %735 = vmatpush1.msra.mxu0 0.0
        %736 = vmatprep.subr.mxu0 0.0
        %737 = vmatpush1.msra.mxu0 0.0
        %738 = vmatprep.subr.mxu0 0.0
        %739 = vmatpush1.msra.mxu0 0.0
        %740 = vmatprep.subr.mxu0 0.0
        %741 = vmatpush1.msra.mxu0 0.0
        %742 = vmatprep.subr.mxu0 0.0
        %743 = vmatpush1.msra.mxu0 0.0
        %744 = vmatprep.subr.mxu0 0.0
        %745 = vmatpush1.msra.mxu0 0.0
        %746 = vmatprep.subr.mxu0 0.0
        %747 = vmatpush1.msra.mxu0 0.0
        %748 = vmatprep.subr.mxu0 0.0
        %749 = vmatpush1.msra.mxu0 0.0
        %750 = vmatprep.subr.mxu0 0.0
        %751 = vmatpush1.msra.mxu0 0.0
        %752 = vmatprep.subr.mxu0 0.0
        %753 = vmatpush1.msra.mxu0 %v511
        %754 = vmatprep.subr.mxu0 0.0
        %755 = vmatpush1.msra.mxu0 %v510
        %756 = vmatprep.subr.mxu0 0.0
        %757 = vmatpush1.msra.mxu0 %v509
        %758 = vmatprep.subr.mxu0 0.0
        %759 = vmatpush1.msra.mxu0 %v508
        %760 = vmatprep.subr.mxu0 0.0
        %761 = vmatpush2.msra.mxu0 0.0
        %762 = vmatprep.subr.mxu0 0.0
        %763 = vmatpush2.msra.mxu0 0.0
        %764 = vmatprep.subr.mxu0 0.0
        %765 = vmatpush2.msra.mxu0 0.0
        %766 = vmatprep.subr.mxu0 0.0
        %767 = vmatpush2.msra.mxu0 0.0
        %768 = vmatprep.subr.mxu0 0.0
        %769 = vmatpush2.msra.mxu0 0.0
        %770 = vmatprep.subr.mxu0 0.0
        %771 = vmatpush2.msra.mxu0 0.0
        %772 = vmatprep.subr.mxu0 0.0
        %773 = vmatpush2.msra.mxu0 0.0
        %774 = vmatprep.subr.mxu0 0.0
        %775 = vmatpush2.msra.mxu0 0.0
        %776 = vmatprep.subr.mxu0 0.0
        %777 = vmatpush2.msra.mxu0 0.0
        %778 = vmatprep.subr.mxu0 0.0
        %779 = vmatpush2.msra.mxu0 0.0
        %780 = vmatprep.subr.mxu0 0.0
        %781 = vmatpush2.msra.mxu0 0.0
        %782 = vmatprep.subr.mxu0 0.0
        %783 = vmatpush2.msra.mxu0 0.0
        %784 = vmatprep.subr.mxu0 0.0
        %785 = vmatpush2.msra.mxu0 0.0
        %786 = vmatprep.subr.mxu0 0.0
        %787 = vmatpush2.msra.mxu0 0.0
        %788 = vmatprep.subr.mxu0 0.0
        %789 = vmatpush2.msra.mxu0 0.0
        %790 = vmatprep.subr.mxu0 0.0
        %791 = vmatpush2.msra.mxu0 0.0
        %792 = vmatprep.mubr.f32.mxu0 0.0
        %793 = vmatmul.mubr.f32.gmra.mxu0 %v726
        %v794 = vpop.f32.mrf.mxu0
        %v795 = vadd.f32 %v517, %v794
        %v796 = vpop.f32.mrf.mxu0
        %797 = vdwg.mxu0
        %v798 = vmax.f32 %v795, 0.0
        %v799 = vld [vmem:[%s3] sm:$0x3]
        %v800 = vld [vmem:[%s4] sm:$0x1]
        %v802 = vlaneseq
        %v803 = vshrl.u32 %v802, 7
        %v804 = vsub.s32 0, %v803
        %v805 = vrot.slane %v800, %v804
        %vm807 = vcmask 15360
        %v809 = vsel %vm807, %v798, 0
        %vm811 = vcmask 1041408
        %v813 = vsel %vm811, %v799, 0
        %815 = vmatprep.subr.mxu0 0.0
        %816 = vmatpush1.msra.mxu0 0.0
        %817 = vmatprep.subr.mxu0 0.0
        %818 = vmatpush1.msra.mxu0 0.0
        %819 = vmatprep.subr.mxu0 0.0
        %820 = vmatpush1.msra.mxu0 0.0
        %821 = vmatprep.subr.mxu0 0.0
        %822 = vmatpush1.msra.mxu0 0.0
        %823 = vmatprep.subr.mxu0 0.0
        %824 = vmatpush1.msra.mxu0 0.0
        %825 = vmatprep.subr.mxu0 0.0
        %826 = vmatpush1.msra.mxu0 0.0
        %827 = vmatprep.subr.mxu0 0.0
        %828 = vmatpush1.msra.mxu0 0.0
        %829 = vmatprep.subr.mxu0 0.0
        %830 = vmatpush1.msra.mxu0 0.0
        %831 = vmatprep.subr.mxu0 0.0
        %832 = vmatpush1.msra.mxu0 0.0
        %833 = vmatprep.subr.mxu0 0.0
        %834 = vmatpush1.msra.mxu0 0.0
        %835 = vmatprep.subr.mxu0 0.0
        %836 = vmatpush1.msra.mxu0 0.0
        %837 = vmatprep.subr.mxu0 0.0
        %838 = vmatpush1.msra.mxu0 0.0
        %839 = vmatprep.subr.mxu0 0.0
        %840 = vmatpush1.msra.mxu0 0.0
        %841 = vmatprep.subr.mxu0 0.0
        %842 = vmatpush1.msra.mxu0 0.0
        %843 = vmatprep.subr.mxu0 0.0
        %844 = vmatpush1.msra.mxu0 0.0
        %845 = vmatprep.subr.mxu0 0.0
        %846 = vmatpush1.msra.mxu0 %v813
        %847 = vmatprep.subr.mxu0 0.0
        %848 = vmatpush2.msra.mxu0 0.0
        %849 = vmatprep.subr.mxu0 0.0
        %850 = vmatpush2.msra.mxu0 0.0
        %851 = vmatprep.subr.mxu0 0.0
        %852 = vmatpush2.msra.mxu0 0.0
        %853 = vmatprep.subr.mxu0 0.0
        %854 = vmatpush2.msra.mxu0 0.0
        %855 = vmatprep.subr.mxu0 0.0
        %856 = vmatpush2.msra.mxu0 0.0
        %857 = vmatprep.subr.mxu0 0.0
        %858 = vmatpush2.msra.mxu0 0.0
        %859 = vmatprep.subr.mxu0 0.0
        %860 = vmatpush2.msra.mxu0 0.0
        %861 = vmatprep.subr.mxu0 0.0
        %862 = vmatpush2.msra.mxu0 0.0
        %863 = vmatprep.subr.mxu0 0.0
        %864 = vmatpush2.msra.mxu0 0.0
        %865 = vmatprep.subr.mxu0 0.0
        %866 = vmatpush2.msra.mxu0 0.0
        %867 = vmatprep.subr.mxu0 0.0
        %868 = vmatpush2.msra.mxu0 0.0
        %869 = vmatprep.subr.mxu0 0.0
        %870 = vmatpush2.msra.mxu0 0.0
        %871 = vmatprep.subr.mxu0 0.0
        %872 = vmatpush2.msra.mxu0 0.0
        %873 = vmatprep.subr.mxu0 0.0
        %874 = vmatpush2.msra.mxu0 0.0
        %875 = vmatprep.subr.mxu0 0.0
        %876 = vmatpush2.msra.mxu0 0.0
        %877 = vmatprep.subr.mxu0 0.0
        %878 = vmatpush2.msra.mxu0 0.0
        %879 = vmatprep.mubr.f32.mxu0 0.0
        %880 = vmatmul.mubr.f32.gmra.mxu0 %v809
        %v881 = vpop.f32.mrf.mxu0
        %v882 = vadd.f32 %v805, %v881
        %v883 = vpop.f32.mrf.mxu0
        %884 = vdwg.mxu0
        %v885 = vsub.f32 0.0, %v882
        %v886 = vmul.f32 %v885, 1.442695
        %v887 = vpow.pop %v886
        %v888 = vadd.f32 %v887, 1.0
        %v889 = vrcp.pop %v888
        %v890 = vlaneseq
        %v891 = vshrl.u32 %v890, 7
        %v892 = vsub.s32 0, %v891
        %v893 = vrot.slane %v889, %v892
        %895 = vbcast.lane.b32.xlu0 %v893, 256
        %v896 = vpop.permute.xlu0 %895
        %s898 = sor.u32 256, 8
        %899 = vbcast.lane.b32.xlu0 %v893, %s898
        %v900 = vpop.permute.xlu0 %899
        %s902 = sor.u32 256, 16
        %903 = vbcast.lane.b32.xlu0 %v893, %s902
        %v904 = vpop.permute.xlu0 %903
        %s906 = sor.u32 256, 24
        %907 = vbcast.lane.b32.xlu0 %v893, %s906
        %v908 = vpop.permute.xlu0 %907
        %v909 = vlaneseq
        %v910 = vshrl.u32 %v909, 7
        %v911 = vsub.s32 1, %v910
        %v912 = vrot.slane %v889, %v911
        %914 = vbcast.lane.b32.xlu0 %v912, 256
        %v915 = vpop.permute.xlu0 %914
        %s917 = sor.u32 256, 8
        %918 = vbcast.lane.b32.xlu0 %v912, %s917
        %v919 = vpop.permute.xlu0 %918
        %s921 = sor.u32 256, 16
        %922 = vbcast.lane.b32.xlu0 %v912, %s921
        %v923 = vpop.permute.xlu0 %922
        %s925 = sor.u32 256, 24
        %926 = vbcast.lane.b32.xlu0 %v912, %s925
        %v927 = vpop.permute.xlu0 %926
        %v928 = vlaneseq
        %v929 = vshrl.u32 %v928, 7
        %v930 = vsub.s32 2, %v929
        %v931 = vrot.slane %v889, %v930
        %933 = vbcast.lane.b32.xlu0 %v931, 256
        %v934 = vpop.permute.xlu0 %933
        %s936 = sor.u32 256, 8
        %937 = vbcast.lane.b32.xlu0 %v931, %s936
        %v938 = vpop.permute.xlu0 %937
        %s940 = sor.u32 256, 16
        %941 = vbcast.lane.b32.xlu0 %v931, %s940
        %v942 = vpop.permute.xlu0 %941
        %s944 = sor.u32 256, 24
        %945 = vbcast.lane.b32.xlu0 %v931, %s944
        %v946 = vpop.permute.xlu0 %945
        %v947 = vlaneseq
        %v948 = vshrl.u32 %v947, 7
        %v949 = vsub.s32 3, %v948
        %v950 = vrot.slane %v889, %v949
        %952 = vbcast.lane.b32.xlu0 %v950, 256
        %v953 = vpop.permute.xlu0 %952
        %s955 = sor.u32 256, 8
        %956 = vbcast.lane.b32.xlu0 %v950, %s955
        %v957 = vpop.permute.xlu0 %956
        %s959 = sor.u32 256, 16
        %960 = vbcast.lane.b32.xlu0 %v950, %s959
        %v961 = vpop.permute.xlu0 %960
        %s963 = sor.u32 256, 24
        %964 = vbcast.lane.b32.xlu0 %v950, %s963
        %v965 = vpop.permute.xlu0 %964
        %v966 = vlaneseq
        %v967 = vshrl.u32 %v966, 7
        %v968 = vsub.s32 4, %v967
        %v969 = vrot.slane %v889, %v968
        %971 = vbcast.lane.b32.xlu0 %v969, 256
        %v972 = vpop.permute.xlu0 %971
        %s974 = sor.u32 256, 8
        %975 = vbcast.lane.b32.xlu0 %v969, %s974
        %v976 = vpop.permute.xlu0 %975
        %s978 = sor.u32 256, 16
        %979 = vbcast.lane.b32.xlu0 %v969, %s978
        %v980 = vpop.permute.xlu0 %979
        %s982 = sor.u32 256, 24
        %983 = vbcast.lane.b32.xlu0 %v969, %s982
        %v984 = vpop.permute.xlu0 %983
        %v985 = vlaneseq
        %v986 = vshrl.u32 %v985, 7
        %v987 = vsub.s32 5, %v986
        %v988 = vrot.slane %v889, %v987
        %990 = vbcast.lane.b32.xlu0 %v988, 256
        %v991 = vpop.permute.xlu0 %990
        %s993 = sor.u32 256, 8
        %994 = vbcast.lane.b32.xlu0 %v988, %s993
        %v995 = vpop.permute.xlu0 %994
        %s997 = sor.u32 256, 16
        %998 = vbcast.lane.b32.xlu0 %v988, %s997
        %v999 = vpop.permute.xlu0 %998
        %s1001 = sor.u32 256, 24
        %1002 = vbcast.lane.b32.xlu0 %v988, %s1001
        %v1003 = vpop.permute.xlu0 %1002
        %v1004 = vlaneseq
        %v1005 = vshrl.u32 %v1004, 7
        %v1006 = vsub.s32 6, %v1005
        %v1007 = vrot.slane %v889, %v1006
        %1009 = vbcast.lane.b32.xlu0 %v1007, 256
        %v1010 = vpop.permute.xlu0 %1009
        %s1012 = sor.u32 256, 8
        %1013 = vbcast.lane.b32.xlu0 %v1007, %s1012
        %v1014 = vpop.permute.xlu0 %1013
        %s1016 = sor.u32 256, 16
        %1017 = vbcast.lane.b32.xlu0 %v1007, %s1016
        %v1018 = vpop.permute.xlu0 %1017
        %s1020 = sor.u32 256, 24
        %1021 = vbcast.lane.b32.xlu0 %v1007, %s1020
        %v1022 = vpop.permute.xlu0 %1021
        %v1023 = vlaneseq
        %v1024 = vshrl.u32 %v1023, 7
        %v1025 = vsub.s32 7, %v1024
        %v1026 = vrot.slane %v889, %v1025
        %1028 = vbcast.lane.b32.xlu0 %v1026, 256
        %v1029 = vpop.permute.xlu0 %1028
        %s1031 = sor.u32 256, 8
        %1032 = vbcast.lane.b32.xlu0 %v1026, %s1031
        %v1033 = vpop.permute.xlu0 %1032
        %s1035 = sor.u32 256, 16
        %1036 = vbcast.lane.b32.xlu0 %v1026, %s1035
        %v1037 = vpop.permute.xlu0 %1036
        %s1039 = sor.u32 256, 24
        %1040 = vbcast.lane.b32.xlu0 %v1026, %s1039
        %v1041 = vpop.permute.xlu0 %1040
        %v1042 = vmul.f32 %v316, %v896
        %v1043 = vmul.f32 %v317, %v896
        %v1044 = vmul.f32 %v318, %v900
        %v1045 = vmul.f32 %v319, %v900
        %v1046 = vmul.f32 %v320, %v904
        %v1047 = vmul.f32 %v321, %v904
        %v1048 = vmul.f32 %v322, %v908
        %v1049 = vmul.f32 %v323, %v908
        %v1050 = vmul.f32 %v324, %v915
        %v1051 = vmul.f32 %v325, %v915
        %v1052 = vmul.f32 %v326, %v919
        %v1053 = vmul.f32 %v327, %v919
        %v1054 = vmul.f32 %v328, %v923
        %v1055 = vmul.f32 %v329, %v923
        %v1056 = vmul.f32 %v330, %v927
        %v1057 = vmul.f32 %v331, %v927
        %v1058 = vmul.f32 %v332, %v934
        %v1059 = vmul.f32 %v333, %v934
        %v1060 = vmul.f32 %v334, %v938
        %v1061 = vmul.f32 %v335, %v938
        %v1062 = vmul.f32 %v336, %v942
        %v1063 = vmul.f32 %v337, %v942
        %v1064 = vmul.f32 %v338, %v946
        %v1065 = vmul.f32 %v339, %v946
        %v1066 = vmul.f32 %v340, %v953
        %v1067 = vmul.f32 %v341, %v953
        %v1068 = vmul.f32 %v342, %v957
        %v1069 = vmul.f32 %v343, %v957
        %v1070 = vmul.f32 %v344, %v961
        %v1071 = vmul.f32 %v345, %v961
        %v1072 = vmul.f32 %v346, %v965
        %v1073 = vmul.f32 %v347, %v965
        %v1074 = vmul.f32 %v348, %v972
        %v1075 = vmul.f32 %v349, %v972
        %v1076 = vmul.f32 %v350, %v976
        %v1077 = vmul.f32 %v351, %v976
        %v1078 = vmul.f32 %v352, %v980
        %v1079 = vmul.f32 %v353, %v980
        %v1080 = vmul.f32 %v354, %v984
        %v1081 = vmul.f32 %v355, %v984
        %v1082 = vmul.f32 %v356, %v991
        %v1083 = vmul.f32 %v357, %v991
        %v1084 = vmul.f32 %v358, %v995
        %v1085 = vmul.f32 %v359, %v995
        %v1086 = vmul.f32 %v360, %v999
        %v1087 = vmul.f32 %v361, %v999
        %v1088 = vmul.f32 %v362, %v1003
        %v1089 = vmul.f32 %v363, %v1003
        %v1090 = vmul.f32 %v364, %v1010
        %v1091 = vmul.f32 %v365, %v1010
        %v1092 = vmul.f32 %v366, %v1014
        %v1093 = vmul.f32 %v367, %v1014
        %v1094 = vmul.f32 %v368, %v1018
        %v1095 = vmul.f32 %v369, %v1018
        %v1096 = vmul.f32 %v370, %v1022
        %v1097 = vmul.f32 %v371, %v1022
        %v1098 = vmul.f32 %v372, %v1029
        %v1099 = vmul.f32 %v373, %v1029
        %v1100 = vmul.f32 %v374, %v1033
        %v1101 = vmul.f32 %v375, %v1033
        %v1102 = vmul.f32 %v376, %v1037
        %v1103 = vmul.f32 %v377, %v1037
        %v1104 = vmul.f32 %v378, %v1041
        %v1105 = vmul.f32 %v379, %v1041
        %v1106 = vmax.f32 %v1042, %v1044
        %v1107 = vmax.f32 %v1106, %v1046
        %v1108 = vmax.f32 %v1107, %v1048
        %v1109 = vrot.slane %v1108, 4
        %v1110 = vmax.f32 %v1108, %v1109
        %v1111 = vrot.slane %v1110, 2
        %v1112 = vmax.f32 %v1110, %v1111
        %v1113 = vrot.slane %v1112, 1
        %v1114 = vmax.f32 %v1112, %v1113
        %v1115 = vmax.f32 %v1043, %v1045
        %v1116 = vmax.f32 %v1115, %v1047
        %v1117 = vmax.f32 %v1116, %v1049
        %v1118 = vrot.slane %v1117, 4
        %v1119 = vmax.f32 %v1117, %v1118
        %v1120 = vrot.slane %v1119, 2
        %v1121 = vmax.f32 %v1119, %v1120
        %v1122 = vrot.slane %v1121, 1
        %v1123 = vmax.f32 %v1121, %v1122
        %v1124 = vmax.f32 %v1050, %v1052
        %v1125 = vmax.f32 %v1124, %v1054
        %v1126 = vmax.f32 %v1125, %v1056
        %v1127 = vrot.slane %v1126, 4
        %v1128 = vmax.f32 %v1126, %v1127
        %v1129 = vrot.slane %v1128, 2
        %v1130 = vmax.f32 %v1128, %v1129
        %v1131 = vrot.slane %v1130, 1
        %v1132 = vmax.f32 %v1130, %v1131
        %v1133 = vmax.f32 %v1051, %v1053
        %v1134 = vmax.f32 %v1133, %v1055
        %v1135 = vmax.f32 %v1134, %v1057
        %v1136 = vrot.slane %v1135, 4
        %v1137 = vmax.f32 %v1135, %v1136
        %v1138 = vrot.slane %v1137, 2
        %v1139 = vmax.f32 %v1137, %v1138
        %v1140 = vrot.slane %v1139, 1
        %v1141 = vmax.f32 %v1139, %v1140
        %v1142 = vmax.f32 %v1058, %v1060
        %v1143 = vmax.f32 %v1142, %v1062
        %v1144 = vmax.f32 %v1143, %v1064
        %v1145 = vrot.slane %v1144, 4
        %v1146 = vmax.f32 %v1144, %v1145
        %v1147 = vrot.slane %v1146, 2
        %v1148 = vmax.f32 %v1146, %v1147
        %v1149 = vrot.slane %v1148, 1
        %v1150 = vmax.f32 %v1148, %v1149
        %v1151 = vmax.f32 %v1059, %v1061
        %v1152 = vmax.f32 %v1151, %v1063
        %v1153 = vmax.f32 %v1152, %v1065
        %v1154 = vrot.slane %v1153, 4
        %v1155 = vmax.f32 %v1153, %v1154
        %v1156 = vrot.slane %v1155, 2
        %v1157 = vmax.f32 %v1155, %v1156
        %v1158 = vrot.slane %v1157, 1
        %v1159 = vmax.f32 %v1157, %v1158
        %v1160 = vmax.f32 %v1066, %v1068
        %v1161 = vmax.f32 %v1160, %v1070
        %v1162 = vmax.f32 %v1161, %v1072
        %v1163 = vrot.slane %v1162, 4
        %v1164 = vmax.f32 %v1162, %v1163
        %v1165 = vrot.slane %v1164, 2
        %v1166 = vmax.f32 %v1164, %v1165
        %v1167 = vrot.slane %v1166, 1
        %v1168 = vmax.f32 %v1166, %v1167
        %v1169 = vmax.f32 %v1067, %v1069
        %v1170 = vmax.f32 %v1169, %v1071
        %v1171 = vmax.f32 %v1170, %v1073
        %v1172 = vrot.slane %v1171, 4
        %v1173 = vmax.f32 %v1171, %v1172
        %v1174 = vrot.slane %v1173, 2
        %v1175 = vmax.f32 %v1173, %v1174
        %v1176 = vrot.slane %v1175, 1
        %v1177 = vmax.f32 %v1175, %v1176
        %v1178 = vmax.f32 %v1074, %v1076
        %v1179 = vmax.f32 %v1178, %v1078
        %v1180 = vmax.f32 %v1179, %v1080
        %v1181 = vrot.slane %v1180, 4
        %v1182 = vmax.f32 %v1180, %v1181
        %v1183 = vrot.slane %v1182, 2
        %v1184 = vmax.f32 %v1182, %v1183
        %v1185 = vrot.slane %v1184, 1
        %v1186 = vmax.f32 %v1184, %v1185
        %v1187 = vmax.f32 %v1075, %v1077
        %v1188 = vmax.f32 %v1187, %v1079
        %v1189 = vmax.f32 %v1188, %v1081
        %v1190 = vrot.slane %v1189, 4
        %v1191 = vmax.f32 %v1189, %v1190
        %v1192 = vrot.slane %v1191, 2
        %v1193 = vmax.f32 %v1191, %v1192
        %v1194 = vrot.slane %v1193, 1
        %v1195 = vmax.f32 %v1193, %v1194
        %v1196 = vmax.f32 %v1082, %v1084
        %v1197 = vmax.f32 %v1196, %v1086
        %v1198 = vmax.f32 %v1197, %v1088
        %v1199 = vrot.slane %v1198, 4
        %v1200 = vmax.f32 %v1198, %v1199
        %v1201 = vrot.slane %v1200, 2
        %v1202 = vmax.f32 %v1200, %v1201
        %v1203 = vrot.slane %v1202, 1
        %v1204 = vmax.f32 %v1202, %v1203
        %v1205 = vmax.f32 %v1083, %v1085
        %v1206 = vmax.f32 %v1205, %v1087
        %v1207 = vmax.f32 %v1206, %v1089
        %v1208 = vrot.slane %v1207, 4
        %v1209 = vmax.f32 %v1207, %v1208
        %v1210 = vrot.slane %v1209, 2
        %v1211 = vmax.f32 %v1209, %v1210
        %v1212 = vrot.slane %v1211, 1
        %v1213 = vmax.f32 %v1211, %v1212
        %v1214 = vmax.f32 %v1090, %v1092
        %v1215 = vmax.f32 %v1214, %v1094
        %v1216 = vmax.f32 %v1215, %v1096
        %v1217 = vrot.slane %v1216, 4
        %v1218 = vmax.f32 %v1216, %v1217
        %v1219 = vrot.slane %v1218, 2
        %v1220 = vmax.f32 %v1218, %v1219
        %v1221 = vrot.slane %v1220, 1
        %v1222 = vmax.f32 %v1220, %v1221
        %v1223 = vmax.f32 %v1091, %v1093
        %v1224 = vmax.f32 %v1223, %v1095
        %v1225 = vmax.f32 %v1224, %v1097
        %v1226 = vrot.slane %v1225, 4
        %v1227 = vmax.f32 %v1225, %v1226
        %v1228 = vrot.slane %v1227, 2
        %v1229 = vmax.f32 %v1227, %v1228
        %v1230 = vrot.slane %v1229, 1
        %v1231 = vmax.f32 %v1229, %v1230
        %v1232 = vmax.f32 %v1098, %v1100
        %v1233 = vmax.f32 %v1232, %v1102
        %v1234 = vmax.f32 %v1233, %v1104
        %v1235 = vrot.slane %v1234, 4
        %v1236 = vmax.f32 %v1234, %v1235
        %v1237 = vrot.slane %v1236, 2
        %v1238 = vmax.f32 %v1236, %v1237
        %v1239 = vrot.slane %v1238, 1
        %v1240 = vmax.f32 %v1238, %v1239
        %v1241 = vmax.f32 %v1099, %v1101
        %v1242 = vmax.f32 %v1241, %v1103
        %v1243 = vmax.f32 %v1242, %v1105
        %v1244 = vrot.slane %v1243, 4
        %v1245 = vmax.f32 %v1243, %v1244
        %v1246 = vrot.slane %v1245, 2
        %v1247 = vmax.f32 %v1245, %v1246
        %v1248 = vrot.slane %v1247, 1
        %v1249 = vmax.f32 %v1247, %v1248
        %v1250 = vadd.f32 %v1042, %v1044
        %v1251 = vadd.f32 %v1250, %v1046
        %v1252 = vadd.f32 %v1251, %v1048
        %v1253 = vrot.slane %v1252, 4
        %v1254 = vadd.f32 %v1252, %v1253
        %v1255 = vrot.slane %v1254, 2
        %v1256 = vadd.f32 %v1254, %v1255
        %v1257 = vrot.slane %v1256, 1
        %v1258 = vadd.f32 %v1256, %v1257
        %v1259 = vadd.f32 %v1043, %v1045
        %v1260 = vadd.f32 %v1259, %v1047
        %v1261 = vadd.f32 %v1260, %v1049
        %v1262 = vrot.slane %v1261, 4
        %v1263 = vadd.f32 %v1261, %v1262
        %v1264 = vrot.slane %v1263, 2
        %v1265 = vadd.f32 %v1263, %v1264
        %v1266 = vrot.slane %v1265, 1
        %v1267 = vadd.f32 %v1265, %v1266
        %v1268 = vadd.f32 %v1050, %v1052
        %v1269 = vadd.f32 %v1268, %v1054
        %v1270 = vadd.f32 %v1269, %v1056
        %v1271 = vrot.slane %v1270, 4
        %v1272 = vadd.f32 %v1270, %v1271
        %v1273 = vrot.slane %v1272, 2
        %v1274 = vadd.f32 %v1272, %v1273
        %v1275 = vrot.slane %v1274, 1
        %v1276 = vadd.f32 %v1274, %v1275
        %v1277 = vadd.f32 %v1051, %v1053
        %v1278 = vadd.f32 %v1277, %v1055
        %v1279 = vadd.f32 %v1278, %v1057
        %v1280 = vrot.slane %v1279, 4
        %v1281 = vadd.f32 %v1279, %v1280
        %v1282 = vrot.slane %v1281, 2
        %v1283 = vadd.f32 %v1281, %v1282
        %v1284 = vrot.slane %v1283, 1
        %v1285 = vadd.f32 %v1283, %v1284
        %v1286 = vadd.f32 %v1058, %v1060
        %v1287 = vadd.f32 %v1286, %v1062
        %v1288 = vadd.f32 %v1287, %v1064
        %v1289 = vrot.slane %v1288, 4
        %v1290 = vadd.f32 %v1288, %v1289
        %v1291 = vrot.slane %v1290, 2
        %v1292 = vadd.f32 %v1290, %v1291
        %v1293 = vrot.slane %v1292, 1
        %v1294 = vadd.f32 %v1292, %v1293
        %v1295 = vadd.f32 %v1059, %v1061
        %v1296 = vadd.f32 %v1295, %v1063
        %v1297 = vadd.f32 %v1296, %v1065
        %v1298 = vrot.slane %v1297, 4
        %v1299 = vadd.f32 %v1297, %v1298
        %v1300 = vrot.slane %v1299, 2
        %v1301 = vadd.f32 %v1299, %v1300
        %v1302 = vrot.slane %v1301, 1
        %v1303 = vadd.f32 %v1301, %v1302
        %v1304 = vadd.f32 %v1066, %v1068
        %v1305 = vadd.f32 %v1304, %v1070
        %v1306 = vadd.f32 %v1305, %v1072
        %v1307 = vrot.slane %v1306, 4
        %v1308 = vadd.f32 %v1306, %v1307
        %v1309 = vrot.slane %v1308, 2
        %v1310 = vadd.f32 %v1308, %v1309
        %v1311 = vrot.slane %v1310, 1
        %v1312 = vadd.f32 %v1310, %v1311
        %v1313 = vadd.f32 %v1067, %v1069
        %v1314 = vadd.f32 %v1313, %v1071
        %v1315 = vadd.f32 %v1314, %v1073
        %v1316 = vrot.slane %v1315, 4
        %v1317 = vadd.f32 %v1315, %v1316
        %v1318 = vrot.slane %v1317, 2
        %v1319 = vadd.f32 %v1317, %v1318
        %v1320 = vrot.slane %v1319, 1
        %v1321 = vadd.f32 %v1319, %v1320
        %v1322 = vadd.f32 %v1074, %v1076
        %v1323 = vadd.f32 %v1322, %v1078
        %v1324 = vadd.f32 %v1323, %v1080
        %v1325 = vrot.slane %v1324, 4
        %v1326 = vadd.f32 %v1324, %v1325
        %v1327 = vrot.slane %v1326, 2
        %v1328 = vadd.f32 %v1326, %v1327
        %v1329 = vrot.slane %v1328, 1
        %v1330 = vadd.f32 %v1328, %v1329
        %v1331 = vadd.f32 %v1075, %v1077
        %v1332 = vadd.f32 %v1331, %v1079
        %v1333 = vadd.f32 %v1332, %v1081
        %v1334 = vrot.slane %v1333, 4
        %v1335 = vadd.f32 %v1333, %v1334
        %v1336 = vrot.slane %v1335, 2
        %v1337 = vadd.f32 %v1335, %v1336
        %v1338 = vrot.slane %v1337, 1
        %v1339 = vadd.f32 %v1337, %v1338
        %v1340 = vadd.f32 %v1082, %v1084
        %v1341 = vadd.f32 %v1340, %v1086
        %v1342 = vadd.f32 %v1341, %v1088
        %v1343 = vrot.slane %v1342, 4
        %v1344 = vadd.f32 %v1342, %v1343
        %v1345 = vrot.slane %v1344, 2
        %v1346 = vadd.f32 %v1344, %v1345
        %v1347 = vrot.slane %v1346, 1
        %v1348 = vadd.f32 %v1346, %v1347
        %v1349 = vadd.f32 %v1083, %v1085
        %v1350 = vadd.f32 %v1349, %v1087
        %v1351 = vadd.f32 %v1350, %v1089
        %v1352 = vrot.slane %v1351, 4
        %v1353 = vadd.f32 %v1351, %v1352
        %v1354 = vrot.slane %v1353, 2
        %v1355 = vadd.f32 %v1353, %v1354
        %v1356 = vrot.slane %v1355, 1
        %v1357 = vadd.f32 %v1355, %v1356
        %v1358 = vadd.f32 %v1090, %v1092
        %v1359 = vadd.f32 %v1358, %v1094
        %v1360 = vadd.f32 %v1359, %v1096
        %v1361 = vrot.slane %v1360, 4
        %v1362 = vadd.f32 %v1360, %v1361
        %v1363 = vrot.slane %v1362, 2
        %v1364 = vadd.f32 %v1362, %v1363
        %v1365 = vrot.slane %v1364, 1
        %v1366 = vadd.f32 %v1364, %v1365
        %v1367 = vadd.f32 %v1091, %v1093
        %v1368 = vadd.f32 %v1367, %v1095
        %v1369 = vadd.f32 %v1368, %v1097
        %v1370 = vrot.slane %v1369, 4
        %v1371 = vadd.f32 %v1369, %v1370
        %v1372 = vrot.slane %v1371, 2
        %v1373 = vadd.f32 %v1371, %v1372
        %v1374 = vrot.slane %v1373, 1
        %v1375 = vadd.f32 %v1373, %v1374
        %v1376 = vadd.f32 %v1098, %v1100
        %v1377 = vadd.f32 %v1376, %v1102
        %v1378 = vadd.f32 %v1377, %v1104
        %v1379 = vrot.slane %v1378, 4
        %v1380 = vadd.f32 %v1378, %v1379
        %v1381 = vrot.slane %v1380, 2
        %v1382 = vadd.f32 %v1380, %v1381
        %v1383 = vrot.slane %v1382, 1
        %v1384 = vadd.f32 %v1382, %v1383
        %v1385 = vadd.f32 %v1099, %v1101
        %v1386 = vadd.f32 %v1385, %v1103
        %v1387 = vadd.f32 %v1386, %v1105
        %v1388 = vrot.slane %v1387, 4
        %v1389 = vadd.f32 %v1387, %v1388
        %v1390 = vrot.slane %v1389, 2
        %v1391 = vadd.f32 %v1389, %v1390
        %v1392 = vrot.slane %v1391, 1
        %v1393 = vadd.f32 %v1391, %v1392
        %v1394 = vmul.f32 %v1258, 0.03125
        %v1395 = vmul.f32 %v1267, 0.03125
        %v1396 = vmul.f32 %v1276, 0.03125
        %v1397 = vmul.f32 %v1285, 0.03125
        %v1398 = vmul.f32 %v1294, 0.03125
        %v1399 = vmul.f32 %v1303, 0.03125
        %v1400 = vmul.f32 %v1312, 0.03125
        %v1401 = vmul.f32 %v1321, 0.03125
        %v1402 = vmul.f32 %v1330, 0.03125
        %v1403 = vmul.f32 %v1339, 0.03125
        %v1404 = vmul.f32 %v1348, 0.03125
        %v1405 = vmul.f32 %v1357, 0.03125
        %v1406 = vmul.f32 %v1366, 0.03125
        %v1407 = vmul.f32 %v1375, 0.03125
        %v1408 = vmul.f32 %v1384, 0.03125
        %v1409 = vmul.f32 %v1393, 0.03125
        %v1426 = vsel %vm711, %v1132, %v1114
        %v1427 = vsel %vm713, %v1150, %v1426
        %v1428 = vsel %vm715, %v1168, %v1427
        %v1429 = vsel %vm717, %v1186, %v1428
        %v1430 = vsel %vm719, %v1204, %v1429
        %v1431 = vsel %vm721, %v1222, %v1430
        %v1432 = vsel %vm723, %v1240, %v1431
        %v1433 = vsel %vm711, %v1141, %v1123
        %v1434 = vsel %vm713, %v1159, %v1433
        %v1435 = vsel %vm715, %v1177, %v1434
        %v1436 = vsel %vm717, %v1195, %v1435
        %v1437 = vsel %vm719, %v1213, %v1436
        %v1438 = vsel %vm721, %v1231, %v1437
        %v1439 = vsel %vm723, %v1249, %v1438
        %v1458 = vsel %vm711, %v1396, %v1394
        %v1459 = vsel %vm713, %v1398, %v1458
        %v1460 = vsel %vm715, %v1400, %v1459
        %v1461 = vsel %vm717, %v1402, %v1460
        %v1462 = vsel %vm719, %v1404, %v1461
        %v1463 = vsel %vm721, %v1406, %v1462
        %v1464 = vsel %vm723, %v1408, %v1463
        %v1465 = vsel %vm711, %v1397, %v1395
        %v1466 = vsel %vm713, %v1399, %v1465
        %v1467 = vsel %vm715, %v1401, %v1466
        %v1468 = vsel %vm717, %v1403, %v1467
        %v1469 = vsel %vm719, %v1405, %v1468
        %v1470 = vsel %vm721, %v1407, %v1469
        %v1471 = vsel %vm723, %v1409, %v1470
        %v1474 = vld [vmem:[#allocation6] sm:$0xff]
        %v1475 = vld [vmem:[#allocation6 + $0x8] sm:$0xff]
        %v1476 = vld [vmem:[#allocation6 + $0x10] sm:$0xff]
        %v1477 = vld [vmem:[#allocation6 + $0x18] sm:$0xff]
        %v1478 = vld [vmem:[#allocation6 + $0x20] sm:$0xff]
        %v1479 = vld [vmem:[#allocation6 + $0x28] sm:$0xff]
        %v1480 = vld [vmem:[#allocation6 + $0x30] sm:$0xff]
        %v1481 = vld [vmem:[#allocation6 + $0x38] sm:$0xff]
        %v1482 = vld [vmem:[#allocation6 + $0x40] sm:$0xff]
        %v1483 = vld [vmem:[#allocation6 + $0x48] sm:$0xff]
        %v1484 = vld [vmem:[#allocation6 + $0x50] sm:$0xff]
        %v1485 = vld [vmem:[#allocation6 + $0x58] sm:$0xff]
        %v1486 = vld [vmem:[#allocation6 + $0x60] sm:$0xff]
        %v1487 = vld [vmem:[#allocation6 + $0x68] sm:$0xff]
        %v1488 = vld [vmem:[#allocation6 + $0x70] sm:$0xff]
        %v1489 = vld [vmem:[#allocation6 + $0x78] sm:$0xff]
        %v1490 = vld [vmem:[#allocation6 + $0x80] sm:$0xff]
        %v1491 = vld [vmem:[#allocation6 + $0x88] sm:$0xff]
        %v1492 = vld [vmem:[#allocation6 + $0x90] sm:$0xff]
        %v1493 = vld [vmem:[#allocation6 + $0x98] sm:$0xff]
        %v1494 = vld [vmem:[#allocation6 + $0xa0] sm:$0xff]
        %v1495 = vld [vmem:[#allocation6 + $0xa8] sm:$0xff]
        %v1496 = vld [vmem:[#allocation6 + $0xb0] sm:$0xff]
        %v1497 = vld [vmem:[#allocation6 + $0xb8] sm:$0xff]
        %v1498 = vld [vmem:[#allocation6 + $0xc0] sm:$0xff]
        %v1499 = vld [vmem:[#allocation6 + $0xc8] sm:$0xff]
        %v1500 = vld [vmem:[#allocation6 + $0xd0] sm:$0xff]
        %v1501 = vld [vmem:[#allocation6 + $0xd8] sm:$0xff]
        %v1502 = vld [vmem:[#allocation6 + $0xe0] sm:$0xff]
        %v1503 = vld [vmem:[#allocation6 + $0xe8] sm:$0xff]
        %v1504 = vld [vmem:[#allocation6 + $0xf0] sm:$0xff]
        %v1505 = vld [vmem:[#allocation6 + $0xf8] sm:$0xff]
        %v1506 = vld [vmem:[#allocation6 + $0x100] sm:$0xff]
        %v1507 = vld [vmem:[#allocation6 + $0x108] sm:$0xff]
        %v1508 = vld [vmem:[#allocation6 + $0x110] sm:$0xff]
        %v1509 = vld [vmem:[#allocation6 + $0x118] sm:$0xff]
        %v1510 = vld [vmem:[#allocation6 + $0x120] sm:$0xff]
        %v1511 = vld [vmem:[#allocation6 + $0x128] sm:$0xff]
        %v1512 = vld [vmem:[#allocation6 + $0x130] sm:$0xff]
        %v1513 = vld [vmem:[#allocation6 + $0x138] sm:$0xff]
        %v1514 = vld [vmem:[#allocation6 + $0x140] sm:$0xff]
        %v1515 = vld [vmem:[#allocation6 + $0x148] sm:$0xff]
        %v1516 = vld [vmem:[#allocation6 + $0x150] sm:$0xff]
        %v1517 = vld [vmem:[#allocation6 + $0x158] sm:$0xff]
        %v1518 = vld [vmem:[#allocation6 + $0x160] sm:$0xff]
        %v1519 = vld [vmem:[#allocation6 + $0x168] sm:$0xff]
        %v1520 = vld [vmem:[#allocation6 + $0x170] sm:$0xff]
        %v1521 = vld [vmem:[#allocation6 + $0x178] sm:$0xff]
        %v1522 = vld [vmem:[#allocation6 + $0x180] sm:$0xff]
        %v1523 = vld [vmem:[#allocation6 + $0x188] sm:$0xff]
        %v1524 = vld [vmem:[#allocation6 + $0x190] sm:$0xff]
        %v1525 = vld [vmem:[#allocation6 + $0x198] sm:$0xff]
        %v1526 = vld [vmem:[#allocation6 + $0x1a0] sm:$0xff]
        %v1527 = vld [vmem:[#allocation6 + $0x1a8] sm:$0xff]
        %v1528 = vld [vmem:[#allocation6 + $0x1b0] sm:$0xff]
        %v1529 = vld [vmem:[#allocation6 + $0x1b8] sm:$0xff]
        %v1530 = vld [vmem:[#allocation6 + $0x1c0] sm:$0xff]
        %v1531 = vld [vmem:[#allocation6 + $0x1c8] sm:$0xff]
        %v1532 = vld [vmem:[#allocation6 + $0x1d0] sm:$0xff]
        %v1533 = vld [vmem:[#allocation6 + $0x1d8] sm:$0xff]
        %v1534 = vld [vmem:[#allocation6 + $0x1e0] sm:$0xff]
        %v1535 = vld [vmem:[#allocation6 + $0x1e8] sm:$0xff]
        %v1536 = vld [vmem:[#allocation6 + $0x1f0] sm:$0xff]
        %v1537 = vld [vmem:[#allocation6 + $0x1f8] sm:$0xff]
        %v1538 = vld [vmem:[#allocation6 + $0x200] sm:$0xff]
        %v1539 = vld [vmem:[#allocation6 + $0x208] sm:$0xff]
        %v1540 = vld [vmem:[#allocation6 + $0x210] sm:$0xff]
        %v1541 = vld [vmem:[#allocation6 + $0x218] sm:$0xff]
        %v1542 = vld [vmem:[#allocation6 + $0x220] sm:$0xff]
        %v1543 = vld [vmem:[#allocation6 + $0x228] sm:$0xff]
        %v1544 = vld [vmem:[#allocation6 + $0x230] sm:$0xff]
        %v1545 = vld [vmem:[#allocation6 + $0x238] sm:$0xff]
        %v1546 = vld [vmem:[#allocation6 + $0x240] sm:$0xff]
        %v1547 = vld [vmem:[#allocation6 + $0x248] sm:$0xff]
        %v1548 = vld [vmem:[#allocation6 + $0x250] sm:$0xff]
        %v1549 = vld [vmem:[#allocation6 + $0x258] sm:$0xff]
        %v1550 = vld [vmem:[#allocation6 + $0x260] sm:$0xff]
        %v1551 = vld [vmem:[#allocation6 + $0x268] sm:$0xff]
        %v1552 = vld [vmem:[#allocation6 + $0x270] sm:$0xff]
        %v1553 = vld [vmem:[#allocation6 + $0x278] sm:$0xff]
        %v1554 = vld [vmem:[#allocation6 + $0x280] sm:$0xff]
        %v1555 = vld [vmem:[#allocation6 + $0x288] sm:$0xff]
        %v1556 = vld [vmem:[#allocation6 + $0x290] sm:$0xff]
        %v1557 = vld [vmem:[#allocation6 + $0x298] sm:$0xff]
        %v1558 = vld [vmem:[#allocation6 + $0x2a0] sm:$0xff]
        %v1559 = vld [vmem:[#allocation6 + $0x2a8] sm:$0xff]
        %v1560 = vld [vmem:[#allocation6 + $0x2b0] sm:$0xff]
        %v1561 = vld [vmem:[#allocation6 + $0x2b8] sm:$0xff]
        %v1562 = vld [vmem:[#allocation6 + $0x2c0] sm:$0xff]
        %v1563 = vld [vmem:[#allocation6 + $0x2c8] sm:$0xff]
        %v1564 = vld [vmem:[#allocation6 + $0x2d0] sm:$0xff]
        %v1565 = vld [vmem:[#allocation6 + $0x2d8] sm:$0xff]
        %v1566 = vld [vmem:[#allocation6 + $0x2e0] sm:$0xff]
        %v1567 = vld [vmem:[#allocation6 + $0x2e8] sm:$0xff]
        %v1568 = vld [vmem:[#allocation6 + $0x2f0] sm:$0xff]
        %v1569 = vld [vmem:[#allocation6 + $0x2f8] sm:$0xff]
        %v1570 = vld [vmem:[#allocation6 + $0x300] sm:$0xff]
        %v1571 = vld [vmem:[#allocation6 + $0x308] sm:$0xff]
        %v1572 = vld [vmem:[#allocation6 + $0x310] sm:$0xff]
        %v1573 = vld [vmem:[#allocation6 + $0x318] sm:$0xff]
        %v1574 = vld [vmem:[#allocation6 + $0x320] sm:$0xff]
        %v1575 = vld [vmem:[#allocation6 + $0x328] sm:$0xff]
        %v1576 = vld [vmem:[#allocation6 + $0x330] sm:$0xff]
        %v1577 = vld [vmem:[#allocation6 + $0x338] sm:$0xff]
        %v1578 = vld [vmem:[#allocation6 + $0x340] sm:$0xff]
        %v1579 = vld [vmem:[#allocation6 + $0x348] sm:$0xff]
        %v1580 = vld [vmem:[#allocation6 + $0x350] sm:$0xff]
        %v1581 = vld [vmem:[#allocation6 + $0x358] sm:$0xff]
        %v1582 = vld [vmem:[#allocation6 + $0x360] sm:$0xff]
        %v1583 = vld [vmem:[#allocation6 + $0x368] sm:$0xff]
        %v1584 = vld [vmem:[#allocation6 + $0x370] sm:$0xff]
        %v1585 = vld [vmem:[#allocation6 + $0x378] sm:$0xff]
        %v1586 = vld [vmem:[#allocation6 + $0x380] sm:$0xff]
        %v1587 = vld [vmem:[#allocation6 + $0x388] sm:$0xff]
        %v1588 = vld [vmem:[#allocation6 + $0x390] sm:$0xff]
        %v1589 = vld [vmem:[#allocation6 + $0x398] sm:$0xff]
        %v1590 = vld [vmem:[#allocation6 + $0x3a0] sm:$0xff]
        %v1591 = vld [vmem:[#allocation6 + $0x3a8] sm:$0xff]
        %v1592 = vld [vmem:[#allocation6 + $0x3b0] sm:$0xff]
        %v1593 = vld [vmem:[#allocation6 + $0x3b8] sm:$0xff]
        %v1594 = vld [vmem:[#allocation6 + $0x3c0] sm:$0xff]
        %v1595 = vld [vmem:[#allocation6 + $0x3c8] sm:$0xff]
        %v1596 = vld [vmem:[#allocation6 + $0x3d0] sm:$0xff]
        %v1597 = vld [vmem:[#allocation6 + $0x3d8] sm:$0xff]
        %v1598 = vld [vmem:[#allocation6 + $0x3e0] sm:$0xff]
        %v1599 = vld [vmem:[#allocation6 + $0x3e8] sm:$0xff]
        %v1600 = vld [vmem:[#allocation6 + $0x3f0] sm:$0xff]
        %v1601 = vld [vmem:[#allocation6 + $0x3f8] sm:$0xff]
        %s1602 = sld [smem:[#allocation2]]
        %v1603 = vstv %s1602
        %1604 = vmatprep.subr.mxu0 %v1505
        %1605 = vmatpush1.msra.mxu0 %v1504
        %1606 = vmatprep.subr.mxu0 %v1503
        %1607 = vmatpush1.msra.mxu0 %v1502
        %1608 = vmatprep.subr.mxu0 %v1501
        %1609 = vmatpush1.msra.mxu0 %v1500
        %1610 = vmatprep.subr.mxu0 %v1499
        %1611 = vmatpush1.msra.mxu0 %v1498
        %1612 = vmatprep.subr.mxu0 %v1497
        %1613 = vmatpush1.msra.mxu0 %v1496
        %1614 = vmatprep.subr.mxu0 %v1495
        %1615 = vmatpush1.msra.mxu0 %v1494
        %1616 = vmatprep.subr.mxu0 %v1493
        %1617 = vmatpush1.msra.mxu0 %v1492
        %1618 = vmatprep.subr.mxu0 %v1491
        %1619 = vmatpush1.msra.mxu0 %v1490
        %1620 = vmatprep.subr.mxu0 %v1489
        %1621 = vmatpush1.msra.mxu0 %v1488
        %1622 = vmatprep.subr.mxu0 %v1487
        %1623 = vmatpush1.msra.mxu0 %v1486
        %1624 = vmatprep.subr.mxu0 %v1485
        %1625 = vmatpush1.msra.mxu0 %v1484
        %1626 = vmatprep.subr.mxu0 %v1483
        %1627 = vmatpush1.msra.mxu0 %v1482
        %1628 = vmatprep.subr.mxu0 %v1481
        %1629 = vmatpush1.msra.mxu0 %v1480
        %1630 = vmatprep.subr.mxu0 %v1479
        %1631 = vmatpush1.msra.mxu0 %v1478
        %1632 = vmatprep.subr.mxu0 %v1477
        %1633 = vmatpush1.msra.mxu0 %v1476
        %1634 = vmatprep.subr.mxu0 %v1475
        %1635 = vmatpush1.msra.mxu0 %v1474
        %1636 = vmatprep.subr.mxu0 %v1537
        %1637 = vmatpush2.msra.mxu0 %v1536
        %1638 = vmatprep.subr.mxu0 %v1535
        %1639 = vmatpush2.msra.mxu0 %v1534
        %1640 = vmatprep.subr.mxu0 %v1533
        %1641 = vmatpush2.msra.mxu0 %v1532
        %1642 = vmatprep.subr.mxu0 %v1531
        %1643 = vmatpush2.msra.mxu0 %v1530
        %1644 = vmatprep.subr.mxu0 %v1529
        %1645 = vmatpush2.msra.mxu0 %v1528
        %1646 = vmatprep.subr.mxu0 %v1527
        %1647 = vmatpush2.msra.mxu0 %v1526
        %1648 = vmatprep.subr.mxu0 %v1525
        %1649 = vmatpush2.msra.mxu0 %v1524
        %1650 = vmatprep.subr.mxu0 %v1523
        %1651 = vmatpush2.msra.mxu0 %v1522
        %1652 = vmatprep.subr.mxu0 %v1521
        %1653 = vmatpush2.msra.mxu0 %v1520
        %1654 = vmatprep.subr.mxu0 %v1519
        %1655 = vmatpush2.msra.mxu0 %v1518
        %1656 = vmatprep.subr.mxu0 %v1517
        %1657 = vmatpush2.msra.mxu0 %v1516
        %1658 = vmatprep.subr.mxu0 %v1515
        %1659 = vmatpush2.msra.mxu0 %v1514
        %1660 = vmatprep.subr.mxu0 %v1513
        %1661 = vmatpush2.msra.mxu0 %v1512
        %1662 = vmatprep.subr.mxu0 %v1511
        %1663 = vmatpush2.msra.mxu0 %v1510
        %1664 = vmatprep.subr.mxu0 %v1509
        %1665 = vmatpush2.msra.mxu0 %v1508
        %1666 = vmatprep.subr.mxu0 %v1507
        %1667 = vmatpush2.msra.mxu0 %v1506
        %1668 = vmatprep.mubr.f32.mxu0 %v1439
        %1669 = vmatmul.mubr.f32.gmra.mxu0 %v1432
        %v1670 = vpop.f32.mrf.mxu0
        %v1671 = vadd.f32 %v1603, %v1670
        %v1672 = vpop.f32.mrf.mxu0
        %v1673 = vadd.f32 %v1603, %v1672
        %1674 = vdwg.mxu0
        %1675 = vmatprep.subr.mxu0 %v1569
        %1676 = vmatpush1.msra.mxu0 %v1568
        %1677 = vmatprep.subr.mxu0 %v1567
        %1678 = vmatpush1.msra.mxu0 %v1566
        %1679 = vmatprep.subr.mxu0 %v1565
        %1680 = vmatpush1.msra.mxu0 %v1564
        %1681 = vmatprep.subr.mxu0 %v1563
        %1682 = vmatpush1.msra.mxu0 %v1562
        %1683 = vmatprep.subr.mxu0 %v1561
        %1684 = vmatpush1.msra.mxu0 %v1560
        %1685 = vmatprep.subr.mxu0 %v1559
        %1686 = vmatpush1.msra.mxu0 %v1558
        %1687 = vmatprep.subr.mxu0 %v1557
        %1688 = vmatpush1.msra.mxu0 %v1556
        %1689 = vmatprep.subr.mxu0 %v1555
        %1690 = vmatpush1.msra.mxu0 %v1554
        %1691 = vmatprep.subr.mxu0 %v1553
        %1692 = vmatpush1.msra.mxu0 %v1552
        %1693 = vmatprep.subr.mxu0 %v1551
        %1694 = vmatpush1.msra.mxu0 %v1550
        %1695 = vmatprep.subr.mxu0 %v1549
        %1696 = vmatpush1.msra.mxu0 %v1548
        %1697 = vmatprep.subr.mxu0 %v1547
        %1698 = vmatpush1.msra.mxu0 %v1546
        %1699 = vmatprep.subr.mxu0 %v1545
        %1700 = vmatpush1.msra.mxu0 %v1544
        %1701 = vmatprep.subr.mxu0 %v1543
        %1702 = vmatpush1.msra.mxu0 %v1542
        %1703 = vmatprep.subr.mxu0 %v1541
        %1704 = vmatpush1.msra.mxu0 %v1540
        %1705 = vmatprep.subr.mxu0 %v1539
        %1706 = vmatpush1.msra.mxu0 %v1538
        %1707 = vmatprep.subr.mxu0 %v1601
        %1708 = vmatpush2.msra.mxu0 %v1600
        %1709 = vmatprep.subr.mxu0 %v1599
        %1710 = vmatpush2.msra.mxu0 %v1598
        %1711 = vmatprep.subr.mxu0 %v1597
        %1712 = vmatpush2.msra.mxu0 %v1596
        %1713 = vmatprep.subr.mxu0 %v1595
        %1714 = vmatpush2.msra.mxu0 %v1594
        %1715 = vmatprep.subr.mxu0 %v1593
        %1716 = vmatpush2.msra.mxu0 %v1592
        %1717 = vmatprep.subr.mxu0 %v1591
        %1718 = vmatpush2.msra.mxu0 %v1590
        %1719 = vmatprep.subr.mxu0 %v1589
        %1720 = vmatpush2.msra.mxu0 %v1588
        %1721 = vmatprep.subr.mxu0 %v1587
        %1722 = vmatpush2.msra.mxu0 %v1586
        %1723 = vmatprep.subr.mxu0 %v1585
        %1724 = vmatpush2.msra.mxu0 %v1584
        %1725 = vmatprep.subr.mxu0 %v1583
        %1726 = vmatpush2.msra.mxu0 %v1582
        %1727 = vmatprep.subr.mxu0 %v1581
        %1728 = vmatpush2.msra.mxu0 %v1580
        %1729 = vmatprep.subr.mxu0 %v1579
        %1730 = vmatpush2.msra.mxu0 %v1578
        %1731 = vmatprep.subr.mxu0 %v1577
        %1732 = vmatpush2.msra.mxu0 %v1576
        %1733 = vmatprep.subr.mxu0 %v1575
        %1734 = vmatpush2.msra.mxu0 %v1574
        %1735 = vmatprep.subr.mxu0 %v1573
        %1736 = vmatpush2.msra.mxu0 %v1572
        %1737 = vmatprep.subr.mxu0 %v1571
        %1738 = vmatpush2.msra.mxu0 %v1570
        %1739 = vmatprep.mubr.f32.mxu0 %v1471
        %1740 = vmatmul.mubr.f32.gmra.mxu0 %v1464
        %v1741 = vpop.f32.mrf.mxu0
        %v1742 = vadd.f32 %v1671, %v1741
        %v1743 = vpop.f32.mrf.mxu0
        %v1744 = vadd.f32 %v1673, %v1743
        %1745 = vdwg.mxu0
        %v1746 = vsub.f32 0.0, %v1742
        %v1747 = vsub.f32 0.0, %v1744
        %v1748 = vmul.f32 %v1746, 1.442695
        %v1749 = vpow.pop %v1748
        %v1750 = vmul.f32 %v1747, 1.442695
        %v1751 = vpow.pop %v1750
        %v1752 = vadd.f32 %v1749, 1.0
        %v1753 = vadd.f32 %v1751, 1.0
        %v1754 = vrcp.pop %v1752
        %v1755 = vrcp.pop %v1753
        %v1758 = vcombine.low %v1754, %v1755
        %v1759 = vcombine.high %v1754, %v1755
        %v1761 = vunpack.c.l.s4 1966171168
        %v1762 = vunpack.c.0.s8 %v1761
        %v1763 = vlaneseq
        %v1764 = vshrl.u32 %v1763, 7
        %v1765 = vsub.s32 %v1762, %v1764
        %v1766 = vrot.slane %v1758, %v1765
        %v1768 = vunpack.c.l.s4 1966171168
        %v1769 = vunpack.c.0.s8 %v1768
        %v1770 = vlaneseq
        %v1771 = vshrl.u32 %v1770, 7
        %v1772 = vsub.s32 %v1769, %v1771
        %v1773 = vrot.slane %v1759, %v1772
        %v1774 = vcombine.high %v1766, %v1766
        %v1775 = vcombine.high %v1773, %v1773
        %v1777 = vunpack.c.l.s4 1966171168
        %v1778 = vunpack.c.0.s8 %v1777
        %v1779 = vlaneseq
        %v1780 = vshrl.u32 %v1779, 7
        %v1781 = vsub.s32 %v1778, %v1780
        %v1782 = vrot.slane %v1766, %v1781
        %v1784 = vunpack.c.l.s4 1966171168
        %v1785 = vunpack.c.0.s8 %v1784
        %v1786 = vlaneseq
        %v1787 = vshrl.u32 %v1786, 7
        %v1788 = vsub.s32 %v1785, %v1787
        %v1789 = vrot.slane %v1773, %v1788
        %v1791 = vunpack.c.l.s4 1966171168
        %v1792 = vunpack.c.0.s8 %v1791
        %v1793 = vlaneseq
        %v1794 = vshrl.u32 %v1793, 7
        %v1795 = vsub.s32 %v1792, %v1794
        %v1796 = vrot.slane %v1774, %v1795
        %v1798 = vunpack.c.l.s4 1966171168
        %v1799 = vunpack.c.0.s8 %v1798
        %v1800 = vlaneseq
        %v1801 = vshrl.u32 %v1800, 7
        %v1802 = vsub.s32 %v1799, %v1801
        %v1803 = vrot.slane %v1775, %v1802
        %v1804 = vcombine.high %v1782, %v1782
        %v1805 = vcombine.high %v1789, %v1789
        %v1806 = vcombine.high %v1796, %v1796
        %v1807 = vcombine.high %v1803, %v1803
        %v1808 = vlaneseq
        %v1809 = vshrl.u32 %v1808, 7
        %v1810 = vsub.s32 0, %v1809
        %v1811 = vrot.slane %v1782, %v1810
        %v1812 = vlaneseq
        %v1813 = vshrl.u32 %v1812, 7
        %v1814 = vsub.s32 1, %v1813
        %v1815 = vrot.slane %v1782, %v1814
        %v1816 = vlaneseq
        %v1817 = vshrl.u32 %v1816, 7
        %v1818 = vsub.s32 0, %v1817
        %v1819 = vrot.slane %v1796, %v1818
        %v1820 = vlaneseq
        %v1821 = vshrl.u32 %v1820, 7
        %v1822 = vsub.s32 1, %v1821
        %v1823 = vrot.slane %v1796, %v1822
        %v1824 = vlaneseq
        %v1825 = vshrl.u32 %v1824, 7
        %v1826 = vsub.s32 0, %v1825
        %v1827 = vrot.slane %v1804, %v1826
        %v1828 = vlaneseq
        %v1829 = vshrl.u32 %v1828, 7
        %v1830 = vsub.s32 1, %v1829
        %v1831 = vrot.slane %v1804, %v1830
        %v1832 = vlaneseq
        %v1833 = vshrl.u32 %v1832, 7
        %v1834 = vsub.s32 0, %v1833
        %v1835 = vrot.slane %v1806, %v1834
        %v1836 = vlaneseq
        %v1837 = vshrl.u32 %v1836, 7
        %v1838 = vsub.s32 1, %v1837
        %v1839 = vrot.slane %v1806, %v1838
        %v1840 = vlaneseq
        %v1841 = vshrl.u32 %v1840, 7
        %v1842 = vsub.s32 0, %v1841
        %v1843 = vrot.slane %v1789, %v1842
        %v1844 = vlaneseq
        %v1845 = vshrl.u32 %v1844, 7
        %v1846 = vsub.s32 1, %v1845
        %v1847 = vrot.slane %v1789, %v1846
        %v1848 = vlaneseq
        %v1849 = vshrl.u32 %v1848, 7
        %v1850 = vsub.s32 0, %v1849
        %v1851 = vrot.slane %v1803, %v1850
        %v1852 = vlaneseq
        %v1853 = vshrl.u32 %v1852, 7
        %v1854 = vsub.s32 1, %v1853
        %v1855 = vrot.slane %v1803, %v1854
        %v1856 = vlaneseq
        %v1857 = vshrl.u32 %v1856, 7
        %v1858 = vsub.s32 0, %v1857
        %v1859 = vrot.slane %v1805, %v1858
        %v1860 = vlaneseq
        %v1861 = vshrl.u32 %v1860, 7
        %v1862 = vsub.s32 1, %v1861
        %v1863 = vrot.slane %v1805, %v1862
        %v1864 = vlaneseq
        %v1865 = vshrl.u32 %v1864, 7
        %v1866 = vsub.s32 0, %v1865
        %v1867 = vrot.slane %v1807, %v1866
        %v1868 = vlaneseq
        %v1869 = vshrl.u32 %v1868, 7
        %v1870 = vsub.s32 1, %v1869
        %v1871 = vrot.slane %v1807, %v1870
        %v1888 = vmul.f32 %v1042, %v1811
        %v1889 = vmul.f32 %v1043, %v1815
        %v1890 = vmul.f32 %v1044, %v1811
        %v1891 = vmul.f32 %v1045, %v1815
        %v1892 = vmul.f32 %v1046, %v1811
        %v1893 = vmul.f32 %v1047, %v1815
        %v1894 = vmul.f32 %v1048, %v1811
        %v1895 = vmul.f32 %v1049, %v1815
        %v1896 = vmul.f32 %v1050, %v1819
        %v1897 = vmul.f32 %v1051, %v1823
        %v1898 = vmul.f32 %v1052, %v1819
        %v1899 = vmul.f32 %v1053, %v1823
        %v1900 = vmul.f32 %v1054, %v1819
        %v1901 = vmul.f32 %v1055, %v1823
        %v1902 = vmul.f32 %v1056, %v1819
        %v1903 = vmul.f32 %v1057, %v1823
        %v1904 = vmul.f32 %v1058, %v1827
        %v1905 = vmul.f32 %v1059, %v1831
        %v1906 = vmul.f32 %v1060, %v1827
        %v1907 = vmul.f32 %v1061, %v1831
        %v1908 = vmul.f32 %v1062, %v1827
        %v1909 = vmul.f32 %v1063, %v1831
        %v1910 = vmul.f32 %v1064, %v1827
        %v1911 = vmul.f32 %v1065, %v1831
        %v1912 = vmul.f32 %v1066, %v1835
        %v1913 = vmul.f32 %v1067, %v1839
        %v1914 = vmul.f32 %v1068, %v1835
        %v1915 = vmul.f32 %v1069, %v1839
        %v1916 = vmul.f32 %v1070, %v1835
        %v1917 = vmul.f32 %v1071, %v1839
        %v1918 = vmul.f32 %v1072, %v1835
        %v1919 = vmul.f32 %v1073, %v1839
        %v1920 = vmul.f32 %v1074, %v1843
        %v1921 = vmul.f32 %v1075, %v1847
        %v1922 = vmul.f32 %v1076, %v1843
        %v1923 = vmul.f32 %v1077, %v1847
        %v1924 = vmul.f32 %v1078, %v1843
        %v1925 = vmul.f32 %v1079, %v1847
        %v1926 = vmul.f32 %v1080, %v1843
        %v1927 = vmul.f32 %v1081, %v1847
        %v1928 = vmul.f32 %v1082, %v1851
        %v1929 = vmul.f32 %v1083, %v1855
        %v1930 = vmul.f32 %v1084, %v1851
        %v1931 = vmul.f32 %v1085, %v1855
        %v1932 = vmul.f32 %v1086, %v1851
        %v1933 = vmul.f32 %v1087, %v1855
        %v1934 = vmul.f32 %v1088, %v1851
        %v1935 = vmul.f32 %v1089, %v1855
        %v1936 = vmul.f32 %v1090, %v1859
        %v1937 = vmul.f32 %v1091, %v1863
        %v1938 = vmul.f32 %v1092, %v1859
        %v1939 = vmul.f32 %v1093, %v1863
        %v1940 = vmul.f32 %v1094, %v1859
        %v1941 = vmul.f32 %v1095, %v1863
        %v1942 = vmul.f32 %v1096, %v1859
        %v1943 = vmul.f32 %v1097, %v1863
        %v1944 = vmul.f32 %v1098, %v1867
        %v1945 = vmul.f32 %v1099, %v1871
        %v1946 = vmul.f32 %v1100, %v1867
        %v1947 = vmul.f32 %v1101, %v1871
        %v1948 = vmul.f32 %v1102, %v1867
        %v1949 = vmul.f32 %v1103, %v1871
        %v1950 = vmul.f32 %v1104, %v1867
        %v1951 = vmul.f32 %v1105, %v1871
        %1952 = vst [vmem:[%s313] sm:$0xff] %v1888
        %1953 = vst [vmem:[%s313 + $0x8] sm:$0xff] %v1889
        %1954 = vst [vmem:[%s313 + $0x10] sm:$0xff] %v1890
        %1955 = vst [vmem:[%s313 + $0x18] sm:$0xff] %v1891
        %1956 = vst [vmem:[%s313 + $0x20] sm:$0xff] %v1892
        %1957 = vst [vmem:[%s313 + $0x28] sm:$0xff] %v1893
        %1958 = vst [vmem:[%s313 + $0x30] sm:$0xff] %v1894
        %1959 = vst [vmem:[%s313 + $0x38] sm:$0xff] %v1895
        %1960 = vst [vmem:[%s313 + $0x40] sm:$0xff] %v1896
        %1961 = vst [vmem:[%s313 + $0x48] sm:$0xff] %v1897
        %1962 = vst [vmem:[%s313 + $0x50] sm:$0xff] %v1898
        %1963 = vst [vmem:[%s313 + $0x58] sm:$0xff] %v1899
        %1964 = vst [vmem:[%s313 + $0x60] sm:$0xff] %v1900
        %1965 = vst [vmem:[%s313 + $0x68] sm:$0xff] %v1901
        %1966 = vst [vmem:[%s313 + $0x70] sm:$0xff] %v1902
        %1967 = vst [vmem:[%s313 + $0x78] sm:$0xff] %v1903
        %1968 = vst [vmem:[%s313 + $0x80] sm:$0xff] %v1904
        %1969 = vst [vmem:[%s313 + $0x88] sm:$0xff] %v1905
        %1970 = vst [vmem:[%s313 + $0x90] sm:$0xff] %v1906
        %1971 = vst [vmem:[%s313 + $0x98] sm:$0xff] %v1907
        %1972 = vst [vmem:[%s313 + $0xa0] sm:$0xff] %v1908
        %1973 = vst [vmem:[%s313 + $0xa8] sm:$0xff] %v1909
        %1974 = vst [vmem:[%s313 + $0xb0] sm:$0xff] %v1910
        %1975 = vst [vmem:[%s313 + $0xb8] sm:$0xff] %v1911
        %1976 = vst [vmem:[%s313 + $0xc0] sm:$0xff] %v1912
        %1977 = vst [vmem:[%s313 + $0xc8] sm:$0xff] %v1913
        %1978 = vst [vmem:[%s313 + $0xd0] sm:$0xff] %v1914
        %1979 = vst [vmem:[%s313 + $0xd8] sm:$0xff] %v1915
        %1980 = vst [vmem:[%s313 + $0xe0] sm:$0xff] %v1916
        %1981 = vst [vmem:[%s313 + $0xe8] sm:$0xff] %v1917
        %1982 = vst [vmem:[%s313 + $0xf0] sm:$0xff] %v1918
        %1983 = vst [vmem:[%s313 + $0xf8] sm:$0xff] %v1919
        %1984 = vst [vmem:[%s313 + $0x100] sm:$0xff] %v1920
        %1985 = vst [vmem:[%s313 + $0x108] sm:$0xff] %v1921
        %1986 = vst [vmem:[%s313 + $0x110] sm:$0xff] %v1922
        %1987 = vst [vmem:[%s313 + $0x118] sm:$0xff] %v1923
        %1988 = vst [vmem:[%s313 + $0x120] sm:$0xff] %v1924
        %1989 = vst [vmem:[%s313 + $0x128] sm:$0xff] %v1925
        %1990 = vst [vmem:[%s313 + $0x130] sm:$0xff] %v1926
        %1991 = vst [vmem:[%s313 + $0x138] sm:$0xff] %v1927
        %1992 = vst [vmem:[%s313 + $0x140] sm:$0xff] %v1928
        %1993 = vst [vmem:[%s313 + $0x148] sm:$0xff] %v1929
        %1994 = vst [vmem:[%s313 + $0x150] sm:$0xff] %v1930
        %1995 = vst [vmem:[%s313 + $0x158] sm:$0xff] %v1931
        %1996 = vst [vmem:[%s313 + $0x160] sm:$0xff] %v1932
        %1997 = vst [vmem:[%s313 + $0x168] sm:$0xff] %v1933
        %1998 = vst [vmem:[%s313 + $0x170] sm:$0xff] %v1934
        %1999 = vst [vmem:[%s313 + $0x178] sm:$0xff] %v1935
        %2000 = vst [vmem:[%s313 + $0x180] sm:$0xff] %v1936
        %2001 = vst [vmem:[%s313 + $0x188] sm:$0xff] %v1937
        %2002 = vst [vmem:[%s313 + $0x190] sm:$0xff] %v1938
        %2003 = vst [vmem:[%s313 + $0x198] sm:$0xff] %v1939
        %2004 = vst [vmem:[%s313 + $0x1a0] sm:$0xff] %v1940
        %2005 = vst [vmem:[%s313 + $0x1a8] sm:$0xff] %v1941
        %2006 = vst [vmem:[%s313 + $0x1b0] sm:$0xff] %v1942
        %2007 = vst [vmem:[%s313 + $0x1b8] sm:$0xff] %v1943
        %2008 = vst [vmem:[%s313 + $0x1c0] sm:$0xff] %v1944
        %2009 = vst [vmem:[%s313 + $0x1c8] sm:$0xff] %v1945
        %2010 = vst [vmem:[%s313 + $0x1d0] sm:$0xff] %v1946
        %2011 = vst [vmem:[%s313 + $0x1d8] sm:$0xff] %v1947
        %2012 = vst [vmem:[%s313 + $0x1e0] sm:$0xff] %v1948
        %2013 = vst [vmem:[%s313 + $0x1e8] sm:$0xff] %v1949
        %2014 = vst [vmem:[%s313 + $0x1f0] sm:$0xff] %v1950
        %2015 = vst [vmem:[%s313 + $0x1f8] sm:$0xff] %v1951
        %s2016 = sand.u32 %s186, 1
        %s2017 = scalar_lea.sflag [#allocation5], %s2016
        %s2018 = sand.u32 %s186, 1
        %s2019 = smul.addr %s2018, 512
        %s2020 = scalar_lea.vmem [#allocation8], %s2019
        // Predicated region
        $region57: #{tpu_custom_call.1} parent=47 // pred_check
          %p2021 = pneg %p196
        $region58: #{tpu_custom_call.1} parent=47 // pred_check_branch
          %2023 = sbr.rel (%p2021) target = $region60
        $region59: #{tpu_custom_call.1} parent=47 // pred_region
          %s2024 = smul.u32 8, %s26
          %s2026 = ssub.s32 8192, 8192
          %2027 = vsyncadd %s2017, %s2026
          %s2028 = smul.addr %s2024, 8
          %s2029 = smul.addr %s2028, 128
          %s2030 = scalar_lea.hbm %s7, %s2029
          %s2031 = sshll.u32 %s2020, 4
          %s2032 = int_to_ptr.vmem [resolvable:$true] %s2031
          %2037 = dma.vmem_to_hbm [thread:$0]  %s2032, 8192, %s2030, %s2017, 256, 256, 16
        $region60: #{tpu_custom_call.1} parent=47 // pred_fallthru
          _
      $region48: #{tpu_custom_call.1} parent=5 // pred_fallthru
        _
      %p2038 = scmp.le.s32.totalorder 2, %s21
      // Predicated region
      $region61: #{tpu_custom_call.1} parent=5 // pred_check
        %p2039 = pneg %p2038
      $region62: #{tpu_custom_call.1} parent=5 // pred_check_branch
        %2041 = sbr.rel (%p2039) target = $region64
      $region63: #{tpu_custom_call.1} parent=5 // pred_region
        %s2042 = ssub.s32 %s21, 2
        // Predicated region
        $region65: #{tpu_custom_call.1} parent=63 // pred_check
          %p2043 = pneg %p202
        $region66: #{tpu_custom_call.1} parent=63 // pred_check_branch
          %2045 = sbr.rel (%p2043) target = $region68
        $region67: #{tpu_custom_call.1} parent=63 // pred_region
          %s2046 = sand.u32 %s187, 1
          %s2047 = scalar_lea.sflag [#allocation5], %s2046
          %s2048 = sand.u32 %s187, 1
          %s2049 = smul.addr %s2048, 512
          %s2050 = scalar_lea.vmem [#allocation8], %s2049
          %2051 = dma.done %s2047, 8192
        $region68: #{tpu_custom_call.1} parent=63 // pred_fallthru
          _
      $region64: #{tpu_custom_call.1} parent=5 // pred_fallthru
        _
    $region6: #{tpu_custom_call.1} parent=1 // loop_footer
      %s25 = sadd.s32 1, %s21
    $region7: #{tpu_custom_call.1} parent=1 // loop_footer_branch
      %20 = sbr.rel target = $region3
    $region8: #{tpu_custom_call.1} parent=1 // loop_exit
      _
    %2052 = vsyncpa [#allocation4], 1
    %s2053 = scalar_lea.sflag [#allocation4], 1
    %2054 = vsyncpa %s2053, 1
    %2055 = vsyncpa [#allocation7], 1
    %2056 = vsyncpa [#allocation5], 1
    %s2057 = scalar_lea.sflag [#allocation5], 1
    %2058 = vsyncpa %s2057, 1

</llo_original>
